<compile_context>
chip_gen: v5e
topology: v5e:2x2
jax: 0.10.0
libtpu: 0.0.40
codegen_flags: <defaults>
</compile_context>

<pallas_src>
import math
import functools

import jax
import jax.numpy as jnp
from jax.experimental import pallas as pl
from jax.experimental.pallas import tpu as pltpu


def _layer_norm(x, g, b, eps=1e-6):
    # torch.nn.LayerNorm(d_model, eps=1e-6): biased variance over last dim.
    mu = jnp.mean(x, axis=-1, keepdims=True)
    var = jnp.mean((x - mu) ** 2, axis=-1, keepdims=True)
    return (x - mu) * jax.lax.rsqrt(var + eps) * g + b


def _encoder_kernel(emb_ref, tem_ref, npm_ref, keyvalid_ref,
                    wq_ref, wk_ref, wv_ref, wo_ref, bo_ref,
                    ln1g_ref, ln1b_ref,
                    w1_ref, b1_ref, w2_ref, b2_ref,
                    ln2g_ref, ln2b_ref,
                    o_ref, *, n_head, d_k, d_v):
    """All THP EncoderLayers (normalize_before=False) for one batch element.

    Grid = (batch, layer).  The output block (constant index over the layer
    axis) doubles as the resident activation accumulator.
    """
    l = pl.program_id(1)
    n_layers = pl.num_programs(1)

    # Layer 0: seed the resident activation with the event embedding.
    @pl.when(l == 0)
    def _():
        o_ref[...] = emb_ref[...]

    # `enc_output += tem_enc` happens at the top of every layer in the ref.
    x = o_ref[0] + tem_ref[0]            # (S, D)
    npm = npm_ref[0]                     # (S, 1), 1.0 where position is valid
    S, D = x.shape
    H = n_head

    # --- attention mask, built in-kernel (causal OR key-is-pad) -----------
    row = jax.lax.broadcasted_iota(jnp.int32, (S, S), 0)
    col = jax.lax.broadcasted_iota(jnp.int32, (S, S), 1)
    key_pad = keyvalid_ref[0] == 0.0                     # (1, S)
    mask = jnp.logical_or(col > row, key_pad)            # (S, S), True = masked

    # --- multi-head self-attention (batched over heads) -------------------
    wq = wq_ref[0]                        # (H, d_k, D)
    wk = wk_ref[0]                        # (H, d_k, D)
    wv = wv_ref[0]                        # (H, d_v, D)
    wo = wo_ref[0]                        # (H, d_v, D)

    xb = jnp.broadcast_to(x[None, :, :], (H, S, D))       # (H, S, D)
    q = jnp.einsum('hsd,hkd->hsk', xb, wq, preferred_element_type=jnp.float32)
    k = jnp.einsum('hsd,hkd->hsk', xb, wk, preferred_element_type=jnp.float32)
    v = jnp.einsum('hsd,hvd->hsv', xb, wv, preferred_element_type=jnp.float32)

    inv_temp = 1.0 / math.sqrt(d_k)
    s = jnp.einsum('hqd,hkd->hqk', q * inv_temp, k,
                   preferred_element_type=jnp.float32)     # (H, S, S)
    s = jnp.where(mask[None, :, :], -1e9, s)               # masked_fill
    s_max = jnp.max(s, axis=-1, keepdims=True)
    e = jnp.exp(s - s_max)
    p = e * pl.reciprocal(jnp.sum(e, axis=-1, keepdims=True), approx=True)

    ctx = jnp.einsum('hqk,hkv->hqv', p, v,
                     preferred_element_type=jnp.float32)   # (H, S, d_v)
    proj = jnp.einsum('hsv,hvd->hsd', ctx, wo,
                      preferred_element_type=jnp.float32)  # (H, S, D)
    attn = jnp.sum(proj, axis=0) + bo_ref[0]               # concat-heads @ Wo + b
    attn = attn + x                                        # residual
    attn = _layer_norm(attn, ln1g_ref[0], ln1b_ref[0])     # post-norm
    attn = attn * npm                                      # *= non_pad_mask

    # --- position-wise feed forward ---------------------------------------
    h1 = jnp.dot(attn, w1_ref[0], preferred_element_type=jnp.float32) + b1_ref[0]
    # TODO(synk): torch F.gelu defaults to the exact (erf) GELU; tanh
    # approximation is used because erf is not guaranteed to lower in Mosaic.
    h1 = jax.nn.gelu(h1, approximate=True)
    h2 = jnp.dot(h1, w2_ref[0], preferred_element_type=jnp.float32) + b2_ref[0]
    y = _layer_norm(h2 + attn, ln2g_ref[0], ln2b_ref[0])   # residual + post-norm
    y = y * npm                                            # *= non_pad_mask

    o_ref[0] = y


def _batch_spec(arr):
    """Block of size 1 along the leading batch dim; constant over the layer axis."""
    nz = arr.ndim - 1
    return pl.BlockSpec((1,) + arr.shape[1:],
                        lambda b, l, _nz=nz: (b,) + (0,) * _nz)


def _layer_spec(arr):
    """Block of size 1 along the leading (stacked) layer dim."""
    nz = arr.ndim - 1
    return pl.BlockSpec((1,) + arr.shape[1:],
                        lambda b, l, _nz=nz: (l,) + (0,) * _nz)


def encoder_forward(event_type, event_time, non_pad_mask, params,
                    *, n_head, d_k, d_v):
    """JAX glue reproducing Encoder.forward; the layer stack runs in ONE kernel."""
    B, S = event_type.shape
    d_model = params["emb"].shape[1]
    n_layers = params["wq"].shape[0]

    # temporal_enc
    pos_vec = params["position_vec"]                                     # (D,)
    r = event_time[:, :, None] / pos_vec
    tem = jnp.zeros_like(r)
    tem = tem.at[:, :, 0::2].set(jnp.sin(r[:, :, 0::2]))
    tem = tem.at[:, :, 1::2].set(jnp.cos(r[:, :, 1::2]))
    tem = tem * non_pad_mask                                             # (B,S,D)

    # event embedding (padding_idx=0 row is zero)
    enc = params["emb"][event_type]                                      # (B,S,D)

    # (B,1,S) key-validity row; the (S,S) causal+keypad mask is built in-kernel.
    key_valid = jnp.transpose(non_pad_mask, (0, 2, 1))                   # (B,1,S)

    kernel = functools.partial(_encoder_kernel, n_head=n_head, d_k=d_k, d_v=d_v)

    weight_names = ["wq", "wk", "wv", "wo", "bo", "ln1_g", "ln1_b",
                    "w1", "b1", "w2", "b2", "ln2_g", "ln2_b"]
    weight_args = [params[n] for n in weight_names]

    return pl.pallas_call(
        kernel,
        out_shape=jax.ShapeDtypeStruct((B, S, d_model), jnp.float32),
        grid=(B, n_layers),
        in_specs=[
            _batch_spec(enc),            # event embedding (read at layer 0)
            _batch_spec(tem),            # temporal encoding (resident over layers)
            _batch_spec(non_pad_mask),   # (B,S,1) query-side pad mask
            _batch_spec(key_valid),      # (B,1,S) key-side pad mask
        ] + [_layer_spec(w) for w in weight_args],
        out_specs=pl.BlockSpec((1, S, d_model), lambda b, l: (b, 0, 0)),
        compiler_params=pltpu.CompilerParams(
            dimension_semantics=("parallel", "arbitrary")),
    )(enc, tem, non_pad_mask, key_valid, *weight_args)


def init_params(key, num_types, d_model, d_inner, n_layers, n_head, d_k, d_v):
    ks = jax.random.split(key, 7)
    emb = 0.02 * jax.random.normal(ks[0], (num_types + 1, d_model), jnp.float32)
    emb = emb.at[0].set(0.0)  # padding_idx = 0
    pos_vec = jnp.array(
        [10000.0 ** (2.0 * (i // 2) / d_model) for i in range(d_model)],
        dtype=jnp.float32)
    scale = 0.1
    L, H = n_layers, n_head
    return dict(
        emb=emb, position_vec=pos_vec,
        wq=scale * jax.random.normal(ks[1], (L, H, d_k, d_model), jnp.float32),
        wk=scale * jax.random.normal(ks[2], (L, H, d_k, d_model), jnp.float32),
        wv=scale * jax.random.normal(ks[3], (L, H, d_v, d_model), jnp.float32),
        wo=scale * jax.random.normal(ks[4], (L, H, d_v, d_model), jnp.float32),
        bo=jnp.zeros((L, 1, d_model), jnp.float32),
        ln1_g=jnp.ones((L, 1, d_model), jnp.float32),
        ln1_b=jnp.zeros((L, 1, d_model), jnp.float32),
        w1=scale * jax.random.normal(ks[5], (L, d_model, d_inner), jnp.float32),
        b1=jnp.zeros((L, 1, d_inner), jnp.float32),
        w2=scale * jax.random.normal(ks[6], (L, d_inner, d_model), jnp.float32),
        b2=jnp.zeros((L, 1, d_model), jnp.float32),
        ln2_g=jnp.ones((L, 1, d_model), jnp.float32),
        ln2_b=jnp.zeros((L, 1, d_model), jnp.float32),
    )


if __name__ == "__main__":
    # Encoder(num_types, d_model, d_inner, n_layers, n_head, d_k, d_v, ...)
    num_types, d_model, d_inner = 5, 32, 64
    n_layers, n_head, d_k, d_v = 2, 4, 8, 8
    B, S = 2, 8

    key = jax.random.PRNGKey(0)
    pkey, tkey, ekey = jax.random.split(key, 3)
    params = init_params(pkey, num_types, d_model, d_inner,
                         n_layers, n_head, d_k, d_v)

    # event_type: 0 = pad, 1..num_types = events; second sequence has padding.
    lengths = jnp.array([S, 5])
    pos = jnp.arange(S)[None, :]
    event_type = jnp.where(pos < lengths[:, None],
                           jax.random.randint(ekey, (B, S), 1, num_types + 1),
                           0).astype(jnp.int32)
    dt = jax.random.uniform(tkey, (B, S), minval=0.1, maxval=1.0,
                            dtype=jnp.float32)
    event_time = jnp.cumsum(dt, axis=1) * (event_type != 0)
    non_pad_mask = (event_type != 0).astype(jnp.float32)[:, :, None]

    out = encoder_forward(event_type, event_time, non_pad_mask, params,
                          n_head=n_head, d_k=d_k, d_v=d_v)
    jax.block_until_ready(out)
    assert out.shape == (B, S, d_model)
    assert bool(jnp.all(jnp.isfinite(out)))
    print("KERNEL_OK")
</pallas_src>

<mosaic_0001>
module attributes {stable_mosaic.version = 11 : i64} {
  func.func @_encoder_kernel(%arg0: i32, %arg1: i32, %arg2: memref<1x8x32xf32, #tpu.memory_space<vmem>>, %arg3: memref<1x8x32xf32, #tpu.memory_space<vmem>>, %arg4: memref<1x8x1xf32, #tpu.memory_space<vmem>>, %arg5: memref<1x1x8xf32, #tpu.memory_space<vmem>>, %arg6: memref<1x4x8x32xf32, #tpu.memory_space<vmem>>, %arg7: memref<1x4x8x32xf32, #tpu.memory_space<vmem>>, %arg8: memref<1x4x8x32xf32, #tpu.memory_space<vmem>>, %arg9: memref<1x4x8x32xf32, #tpu.memory_space<vmem>>, %arg10: memref<1x1x32xf32, #tpu.memory_space<vmem>>, %arg11: memref<1x1x32xf32, #tpu.memory_space<vmem>>, %arg12: memref<1x1x32xf32, #tpu.memory_space<vmem>>, %arg13: memref<1x32x64xf32, #tpu.memory_space<vmem>>, %arg14: memref<1x1x64xf32, #tpu.memory_space<vmem>>, %arg15: memref<1x64x32xf32, #tpu.memory_space<vmem>>, %arg16: memref<1x1x32xf32, #tpu.memory_space<vmem>>, %arg17: memref<1x1x32xf32, #tpu.memory_space<vmem>>, %arg18: memref<1x1x32xf32, #tpu.memory_space<vmem>>, %arg19: memref<1x8x32xf32, #tpu.memory_space<vmem>>) attributes {dimension_semantics = [#tpu.dimension_semantics<parallel>, #tpu.dimension_semantics<arbitrary>], iteration_bounds = array<i64: 2, 2>, scalar_prefetch = 0 : i64, scratch_operands = 0 : i64, tpu.core_type = #tpu.core_type<tc>, window_params = [{transform_indices = @transform_0, window_bounds = array<i64: 1, 8, 32>}, {transform_indices = @transform_1, window_bounds = array<i64: 1, 8, 32>}, {transform_indices = @transform_2, window_bounds = array<i64: 1, 8, 1>}, {transform_indices = @transform_3, window_bounds = array<i64: 1, 1, 8>}, {transform_indices = @transform_4, window_bounds = array<i64: 1, 4, 8, 32>}, {transform_indices = @transform_5, window_bounds = array<i64: 1, 4, 8, 32>}, {transform_indices = @transform_6, window_bounds = array<i64: 1, 4, 8, 32>}, {transform_indices = @transform_7, window_bounds = array<i64: 1, 4, 8, 32>}, {transform_indices = @transform_8, window_bounds = array<i64: 1, 1, 32>}, {transform_indices = @transform_9, window_bounds = array<i64: 1, 1, 32>}, {transform_indices = @transform_10, window_bounds = array<i64: 1, 1, 32>}, {transform_indices = @transform_11, window_bounds = array<i64: 1, 32, 64>}, {transform_indices = @transform_12, window_bounds = array<i64: 1, 1, 64>}, {transform_indices = @transform_13, window_bounds = array<i64: 1, 64, 32>}, {transform_indices = @transform_14, window_bounds = array<i64: 1, 1, 32>}, {transform_indices = @transform_15, window_bounds = array<i64: 1, 1, 32>}, {transform_indices = @transform_16, window_bounds = array<i64: 1, 1, 32>}, {transform_indices = @transform_17, window_bounds = array<i64: 1, 8, 32>}]} {
    %c0_i32 = arith.constant 0 : i32
    %0 = arith.cmpi eq, %arg1, %c0_i32 : i32
    %1 = arith.extui %0 : i1 to i32
    %c0_i32_0 = arith.constant 0 : i32
    %2 = arith.cmpi ne, %1, %c0_i32_0 : i32
    scf.if %2 {
      %c0_85 = arith.constant 0 : index
      %c0_86 = arith.constant 0 : index
      %c0_87 = arith.constant 0 : index
      %146 = vector.load %arg2[%c0_85, %c0_86, %c0_87] : memref<1x8x32xf32, #tpu.memory_space<vmem>>, vector<1x8x32xf32>
      %c0_88 = arith.constant 0 : index
      %c0_89 = arith.constant 0 : index
      %c0_90 = arith.constant 0 : index
      %147 = vector.load %arg19[%c0_88, %c0_89, %c0_90] : memref<1x8x32xf32, #tpu.memory_space<vmem>>, vector<1x8x32xf32>
      tpu.vector_store %arg19[%c0_88, %c0_89, %c0_90], %146 {strides = array<i32>} : memref<1x8x32xf32, #tpu.memory_space<vmem>>, vector<1x8x32xf32>,
    } else {
    }
    %c0 = arith.constant 0 : index
    %c0_1 = arith.constant 0 : index
    %c0_2 = arith.constant 0 : index
    %3 = vector.load %arg19[%c0, %c0_1, %c0_2] : memref<1x8x32xf32, #tpu.memory_space<vmem>>, vector<1x8x32xf32>
    %4 = vector.shape_cast %3 : vector<1x8x32xf32> to vector<8x32xf32>
    %c0_3 = arith.constant 0 : index
    %c0_4 = arith.constant 0 : index
    %c0_5 = arith.constant 0 : index
    %5 = vector.load %arg3[%c0_3, %c0_4, %c0_5] : memref<1x8x32xf32, #tpu.memory_space<vmem>>, vector<1x8x32xf32>
    %6 = vector.shape_cast %5 : vector<1x8x32xf32> to vector<8x32xf32>
    %7 = arith.addf %4, %6 : vector<8x32xf32>
    %c0_6 = arith.constant 0 : index
    %c0_7 = arith.constant 0 : index
    %c0_8 = arith.constant 0 : index
    %8 = vector.load %arg4[%c0_6, %c0_7, %c0_8] : memref<1x8x1xf32, #tpu.memory_space<vmem>>, vector<1x8x1xf32>
    %9 = vector.shape_cast %8 : vector<1x8x1xf32> to vector<8x1xf32>
    %10 = tpu.iota {dimensions = array<i32: 0>} : vector<8x8xi32>
    %11 = tpu.iota {dimensions = array<i32: 1>} : vector<8x8xi32>
    %c0_9 = arith.constant 0 : index
    %c0_10 = arith.constant 0 : index
    %c0_11 = arith.constant 0 : index
    %12 = vector.load %arg5[%c0_9, %c0_10, %c0_11] : memref<1x1x8xf32, #tpu.memory_space<vmem>>, vector<1x1x8xf32>
    %13 = vector.shape_cast %12 : vector<1x1x8xf32> to vector<1x8xf32>
    %cst = arith.constant 0.000000e+00 : f32
    %14 = vector.broadcast %cst : f32 to vector<1x8xf32>
    %15 = arith.cmpf oeq, %13, %14 : vector<1x8xf32>
    %16 = arith.cmpi sgt, %11, %10 : vector<8x8xi32>
    %17 = vector.broadcast %15 : vector<1x8xi1> to vector<8x8xi1>
    %18 = arith.ori %16, %17 : vector<8x8xi1>
    %c0_12 = arith.constant 0 : index
    %c0_13 = arith.constant 0 : index
    %c0_14 = arith.constant 0 : index
    %c0_15 = arith.constant 0 : index
    %19 = vector.load %arg6[%c0_12, %c0_13, %c0_14, %c0_15] : memref<1x4x8x32xf32, #tpu.memory_space<vmem>>, vector<1x4x8x32xf32>
    %20 = vector.shape_cast %19 : vector<1x4x8x32xf32> to vector<4x8x32xf32>
    %c0_16 = arith.constant 0 : index
    %c0_17 = arith.constant 0 : index
    %c0_18 = arith.constant 0 : index
    %c0_19 = arith.constant 0 : index
    %21 = vector.load %arg7[%c0_16, %c0_17, %c0_18, %c0_19] : memref<1x4x8x32xf32, #tpu.memory_space<vmem>>, vector<1x4x8x32xf32>
    %22 = vector.shape_cast %21 : vector<1x4x8x32xf32> to vector<4x8x32xf32>
    %c0_20 = arith.constant 0 : index
    %c0_21 = arith.constant 0 : index
    %c0_22 = arith.constant 0 : index
    %c0_23 = arith.constant 0 : index
    %23 = vector.load %arg8[%c0_20, %c0_21, %c0_22, %c0_23] : memref<1x4x8x32xf32, #tpu.memory_space<vmem>>, vector<1x4x8x32xf32>
    %24 = vector.shape_cast %23 : vector<1x4x8x32xf32> to vector<4x8x32xf32>
    %c0_24 = arith.constant 0 : index
    %c0_25 = arith.constant 0 : index
    %c0_26 = arith.constant 0 : index
    %c0_27 = arith.constant 0 : index
    %25 = vector.load %arg9[%c0_24, %c0_25, %c0_26, %c0_27] : memref<1x4x8x32xf32, #tpu.memory_space<vmem>>, vector<1x4x8x32xf32>
    %26 = vector.shape_cast %25 : vector<1x4x8x32xf32> to vector<4x8x32xf32>
    %27 = vector.shape_cast %7 : vector<8x32xf32> to vector<1x8x32xf32>
    %28 = vector.shape_cast %27 : vector<1x8x32xf32> to vector<1x8x32xf32>
    %29 = vector.broadcast %28 : vector<1x8x32xf32> to vector<4x8x32xf32>
    "tpu.trace_start"() <{level = 10 : i32, message = "hsd,hkd->hsk"}> : () -> ()
    %cst_28 = arith.constant dense<0.000000e+00> : vector<4x8x8xf32>
    %30 = tpu.matmul %29, %20, %cst_28 {dimension_numbers = #tpu.dot_dimension_numbers<[2], [2], [1], [1], [0, 0, 0, 1, 1, 1], [0], [0]>} : vector<4x8x32xf32>, vector<4x8x32xf32>, vector<4x8x8xf32> -> vector<4x8x8xf32>
    %cst_29 = arith.constant dense<0.000000e+00> : vector<4x8x8xf32>
    %31 = tpu.matmul %29, %22, %cst_29 {dimension_numbers = #tpu.dot_dimension_numbers<[2], [2], [1], [1], [0, 0, 0, 1, 1, 1], [0], [0]>} : vector<4x8x32xf32>, vector<4x8x32xf32>, vector<4x8x8xf32> -> vector<4x8x8xf32>
    "tpu.trace_stop"() : () -> ()
    "tpu.trace_start"() <{level = 10 : i32, message = "hsd,hvd->hsv"}> : () -> ()
    %cst_30 = arith.constant dense<0.000000e+00> : vector<4x8x8xf32>
    %32 = tpu.matmul %29, %24, %cst_30 {dimension_numbers = #tpu.dot_dimension_numbers<[2], [2], [1], [1], [0, 0, 0, 1, 1, 1], [0], [0]>} : vector<4x8x32xf32>, vector<4x8x32xf32>, vector<4x8x8xf32> -> vector<4x8x8xf32>
    "tpu.trace_stop"() : () -> ()
    %cst_31 = arith.constant 0.353553385 : f32
    %33 = vector.broadcast %cst_31 : f32 to vector<4x8x8xf32>
    %34 = arith.mulf %30, %33 : vector<4x8x8xf32>
    "tpu.trace_start"() <{level = 10 : i32, message = "hqd,hkd->hqk"}> : () -> ()
    %cst_32 = arith.constant dense<0.000000e+00> : vector<4x8x8xf32>
    %35 = tpu.matmul %34, %31, %cst_32 {dimension_numbers = #tpu.dot_dimension_numbers<[2], [2], [1], [1], [0, 0, 0, 1, 1, 1], [0], [0]>} : vector<4x8x8xf32>, vector<4x8x8xf32>, vector<4x8x8xf32> -> vector<4x8x8xf32>
    "tpu.trace_stop"() : () -> ()
    %36 = vector.shape_cast %18 : vector<8x8xi1> to vector<1x8x8xi1>
    %cst_33 = arith.constant -1.000000e+09 : f32
    %37 = vector.shape_cast %36 : vector<1x8x8xi1> to vector<1x8x8xi1>
    %38 = vector.broadcast %37 : vector<1x8x8xi1> to vector<4x8x8xi1>
    %39 = vector.broadcast %cst_33 : f32 to vector<4x8x8xf32>
    %40 = arith.select %38, %39, %35 : vector<4x8x8xi1>, vector<4x8x8xf32>
    %cst_34 = arith.constant dense<0xFF800000> : vector<4x8xf32>
    %41 = vector.multi_reduction <maximumf>, %40, %cst_34 [2] : vector<4x8x8xf32> to vector<4x8xf32>
    %42 = vector.shape_cast %41 : vector<4x8xf32> to vector<4x8x1xf32>
    %43 = vector.broadcast %42 : vector<4x8x1xf32> to vector<4x8x8xf32>
    %44 = arith.subf %40, %43 : vector<4x8x8xf32>
    %45 = math.exp %44 : vector<4x8x8xf32>
    %cst_35 = arith.constant dense<0.000000e+00> : vector<4x8xf32>
    %46 = vector.multi_reduction <add>, %45, %cst_35 [2] : vector<4x8x8xf32> to vector<4x8xf32>
    %47 = vector.shape_cast %46 : vector<4x8xf32> to vector<4x8x1xf32>
    %48 = tpu.reciprocal %47 {approx = true} : vector<4x8x1xf32> -> vector<4x8x1xf32>
    %49 = vector.broadcast %48 : vector<4x8x1xf32> to vector<4x8x8xf32>
    %50 = arith.mulf %45, %49 : vector<4x8x8xf32>
    "tpu.trace_start"() <{level = 10 : i32, message = "hqk,hkv->hqv"}> : () -> ()
    %cst_36 = arith.constant dense<0.000000e+00> : vector<4x8x8xf32>
    %51 = tpu.matmul %50, %32, %cst_36 {dimension_numbers = #tpu.dot_dimension_numbers<[2], [1], [1], [2], [0, 0, 0, 1, 1, 2], [0], [0]>} : vector<4x8x8xf32>, vector<4x8x8xf32>, vector<4x8x8xf32> -> vector<4x8x8xf32>
    "tpu.trace_stop"() : () -> ()
    "tpu.trace_start"() <{level = 10 : i32, message = "hsv,hvd->hsd"}> : () -> ()
    %cst_37 = arith.constant dense<0.000000e+00> : vector<4x8x32xf32>
    %52 = tpu.matmul %51, %26, %cst_37 {dimension_numbers = #tpu.dot_dimension_numbers<[2], [1], [1], [2], [0, 0, 0, 1, 1, 2], [0], [0]>} : vector<4x8x8xf32>, vector<4x8x32xf32>, vector<4x8x32xf32> -> vector<4x8x32xf32>
    "tpu.trace_stop"() : () -> ()
    %cst_38 = arith.constant dense<0.000000e+00> : vector<8x32xf32>
    %53 = vector.multi_reduction <add>, %52, %cst_38 [0] : vector<4x8x32xf32> to vector<8x32xf32>
    %c0_39 = arith.constant 0 : index
    %c0_40 = arith.constant 0 : index
    %c0_41 = arith.constant 0 : index
    %54 = vector.load %arg10[%c0_39, %c0_40, %c0_41] : memref<1x1x32xf32, #tpu.memory_space<vmem>>, vector<1x1x32xf32>
    %55 = vector.shape_cast %54 : vector<1x1x32xf32> to vector<1x32xf32>
    %56 = vector.broadcast %55 : vector<1x32xf32> to vector<8x32xf32>
    %57 = arith.addf %53, %56 : vector<8x32xf32>
    %58 = arith.addf %57, %7 : vector<8x32xf32>
    %c0_42 = arith.constant 0 : index
    %c0_43 = arith.constant 0 : index
    %c0_44 = arith.constant 0 : index
    %59 = vector.load %arg11[%c0_42, %c0_43, %c0_44] : memref<1x1x32xf32, #tpu.memory_space<vmem>>, vector<1x1x32xf32>
    %60 = vector.shape_cast %59 : vector<1x1x32xf32> to vector<1x32xf32>
    %c0_45 = arith.constant 0 : index
    %c0_46 = arith.constant 0 : index
    %c0_47 = arith.constant 0 : index
    %61 = vector.load %arg12[%c0_45, %c0_46, %c0_47] : memref<1x1x32xf32, #tpu.memory_space<vmem>>, vector<1x1x32xf32>
    %62 = vector.shape_cast %61 : vector<1x1x32xf32> to vector<1x32xf32>
    %cst_48 = arith.constant dense<0.000000e+00> : vector<8xf32>
    %63 = vector.multi_reduction <add>, %58, %cst_48 [1] : vector<8x32xf32> to vector<8xf32>
    %64 = vector.shape_cast %63 : vector<8xf32> to vector<8x1xf32>
    %cst_49 = arith.constant 3.200000e+01 : f32
    %65 = vector.broadcast %cst_49 : f32 to vector<8x1xf32>
    %66 = arith.divf %64, %65 : vector<8x1xf32>
    %67 = vector.broadcast %66 : vector<8x1xf32> to vector<8x32xf32>
    %68 = arith.subf %58, %67 : vector<8x32xf32>
    %69 = arith.mulf %68, %68 : vector<8x32xf32>
    %cst_50 = arith.constant dense<0.000000e+00> : vector<8xf32>
    %70 = vector.multi_reduction <add>, %69, %cst_50 [1] : vector<8x32xf32> to vector<8xf32>
    %71 = vector.shape_cast %70 : vector<8xf32> to vector<8x1xf32>
    %cst_51 = arith.constant 3.200000e+01 : f32
    %72 = vector.broadcast %cst_51 : f32 to vector<8x1xf32>
    %73 = arith.divf %71, %72 : vector<8x1xf32>
    %74 = vector.broadcast %66 : vector<8x1xf32> to vector<8x32xf32>
    %75 = arith.subf %58, %74 : vector<8x32xf32>
    %cst_52 = arith.constant 9.99999997E-7 : f32
    %76 = vector.broadcast %cst_52 : f32 to vector<8x1xf32>
    %77 = arith.addf %73, %76 : vector<8x1xf32>
    %78 = math.rsqrt %77 : vector<8x1xf32>
    %79 = vector.broadcast %78 : vector<8x1xf32> to vector<8x32xf32>
    %80 = arith.mulf %75, %79 : vector<8x32xf32>
    %81 = vector.broadcast %60 : vector<1x32xf32> to vector<8x32xf32>
    %82 = arith.mulf %80, %81 : vector<8x32xf32>
    %83 = vector.broadcast %62 : vector<1x32xf32> to vector<8x32xf32>
    %84 = arith.addf %82, %83 : vector<8x32xf32>
    %85 = vector.broadcast %9 : vector<8x1xf32> to vector<8x32xf32>
    %86 = arith.mulf %84, %85 : vector<8x32xf32>
    %c0_53 = arith.constant 0 : index
    %c0_54 = arith.constant 0 : index
    %c0_55 = arith.constant 0 : index
    %87 = vector.load %arg13[%c0_53, %c0_54, %c0_55] : memref<1x32x64xf32, #tpu.memory_space<vmem>>, vector<1x32x64xf32>
    %88 = vector.shape_cast %87 : vector<1x32x64xf32> to vector<32x64xf32>
    %cst_56 = arith.constant dense<0.000000e+00> : vector<8x64xf32>
    %89 = tpu.matmul %86, %88, %cst_56 {dimension_numbers = #tpu.dot_dimension_numbers<[1], [0], [0], [1], [0, 0, 1, 1], [], []>} : vector<8x32xf32>, vector<32x64xf32>, vector<8x64xf32> -> vector<8x64xf32>
    %c0_57 = arith.constant 0 : index
    %c0_58 = arith.constant 0 : index
    %c0_59 = arith.constant 0 : index
    %90 = vector.load %arg14[%c0_57, %c0_58, %c0_59] : memref<1x1x64xf32, #tpu.memory_space<vmem>>, vector<1x1x64xf32>
    %91 = vector.shape_cast %90 : vector<1x1x64xf32> to vector<1x64xf32>
    %92 = vector.broadcast %91 : vector<1x64xf32> to vector<8x64xf32>
    %93 = arith.addf %89, %92 : vector<8x64xf32>
    %94 = arith.mulf %93, %93 : vector<8x64xf32>
    %95 = arith.mulf %93, %94 : vector<8x64xf32>
    %cst_60 = arith.constant 4.471500e-02 : f32
    %96 = vector.broadcast %cst_60 : f32 to vector<8x64xf32>
    %97 = arith.mulf %96, %95 : vector<8x64xf32>
    %98 = arith.addf %93, %97 : vector<8x64xf32>
    %cst_61 = arith.constant 0.797884583 : f32
    %99 = vector.broadcast %cst_61 : f32 to vector<8x64xf32>
    %100 = arith.mulf %99, %98 : vector<8x64xf32>
    %101 = math.tanh %100 : vector<8x64xf32>
    %cst_62 = arith.constant 1.000000e+00 : f32
    %102 = vector.broadcast %cst_62 : f32 to vector<8x64xf32>
    %103 = arith.addf %102, %101 : vector<8x64xf32>
    %cst_63 = arith.constant 5.000000e-01 : f32
    %104 = vector.broadcast %cst_63 : f32 to vector<8x64xf32>
    %105 = arith.mulf %104, %103 : vector<8x64xf32>
    %106 = arith.mulf %93, %105 : vector<8x64xf32>
    %c0_64 = arith.constant 0 : index
    %c0_65 = arith.constant 0 : index
    %c0_66 = arith.constant 0 : index
    %107 = vector.load %arg15[%c0_64, %c0_65, %c0_66] : memref<1x64x32xf32, #tpu.memory_space<vmem>>, vector<1x64x32xf32>
    %108 = vector.shape_cast %107 : vector<1x64x32xf32> to vector<64x32xf32>
    %cst_67 = arith.constant dense<0.000000e+00> : vector<8x32xf32>
    %109 = tpu.matmul %106, %108, %cst_67 {dimension_numbers = #tpu.dot_dimension_numbers<[1], [0], [0], [1], [0, 0, 1, 1], [], []>} : vector<8x64xf32>, vector<64x32xf32>, vector<8x32xf32> -> vector<8x32xf32>
    %c0_68 = arith.constant 0 : index
    %c0_69 = arith.constant 0 : index
    %c0_70 = arith.constant 0 : index
    %110 = vector.load %arg16[%c0_68, %c0_69, %c0_70] : memref<1x1x32xf32, #tpu.memory_space<vmem>>, vector<1x1x32xf32>
    %111 = vector.shape_cast %110 : vector<1x1x32xf32> to vector<1x32xf32>
    %112 = vector.broadcast %111 : vector<1x32xf32> to vector<8x32xf32>
    %113 = arith.addf %109, %112 : vector<8x32xf32>
    %114 = arith.addf %113, %86 : vector<8x32xf32>
    %c0_71 = arith.constant 0 : index
    %c0_72 = arith.constant 0 : index
    %c0_73 = arith.constant 0 : index
    %115 = vector.load %arg17[%c0_71, %c0_72, %c0_73] : memref<1x1x32xf32, #tpu.memory_space<vmem>>, vector<1x1x32xf32>
    %116 = vector.shape_cast %115 : vector<1x1x32xf32> to vector<1x32xf32>
    %c0_74 = arith.constant 0 : index
    %c0_75 = arith.constant 0 : index
    %c0_76 = arith.constant 0 : index
    %117 = vector.load %arg18[%c0_74, %c0_75, %c0_76] : memref<1x1x32xf32, #tpu.memory_space<vmem>>, vector<1x1x32xf32>
    %118 = vector.shape_cast %117 : vector<1x1x32xf32> to vector<1x32xf32>
    %cst_77 = arith.constant dense<0.000000e+00> : vector<8xf32>
    %119 = vector.multi_reduction <add>, %114, %cst_77 [1] : vector<8x32xf32> to vector<8xf32>
    %120 = vector.shape_cast %119 : vector<8xf32> to vector<8x1xf32>
    %cst_78 = arith.constant 3.200000e+01 : f32
    %121 = vector.broadcast %cst_78 : f32 to vector<8x1xf32>
    %122 = arith.divf %120, %121 : vector<8x1xf32>
    %123 = vector.broadcast %122 : vector<8x1xf32> to vector<8x32xf32>
    %124 = arith.subf %114, %123 : vector<8x32xf32>
    %125 = arith.mulf %124, %124 : vector<8x32xf32>
    %cst_79 = arith.constant dense<0.000000e+00> : vector<8xf32>
    %126 = vector.multi_reduction <add>, %125, %cst_79 [1] : vector<8x32xf32> to vector<8xf32>
    %127 = vector.shape_cast %126 : vector<8xf32> to vector<8x1xf32>
    %cst_80 = arith.constant 3.200000e+01 : f32
    %128 = vector.broadcast %cst_80 : f32 to vector<8x1xf32>
    %129 = arith.divf %127, %128 : vector<8x1xf32>
    %130 = vector.broadcast %122 : vector<8x1xf32> to vector<8x32xf32>
    %131 = arith.subf %114, %130 : vector<8x32xf32>
    %cst_81 = arith.constant 9.99999997E-7 : f32
    %132 = vector.broadcast %cst_81 : f32 to vector<8x1xf32>
    %133 = arith.addf %129, %132 : vector<8x1xf32>
    %134 = math.rsqrt %133 : vector<8x1xf32>
    %135 = vector.broadcast %134 : vector<8x1xf32> to vector<8x32xf32>
    %136 = arith.mulf %131, %135 : vector<8x32xf32>
    %137 = vector.broadcast %116 : vector<1x32xf32> to vector<8x32xf32>
    %138 = arith.mulf %136, %137 : vector<8x32xf32>
    %139 = vector.broadcast %118 : vector<1x32xf32> to vector<8x32xf32>
    %140 = arith.addf %138, %139 : vector<8x32xf32>
    %141 = vector.broadcast %9 : vector<8x1xf32> to vector<8x32xf32>
    %142 = arith.mulf %140, %141 : vector<8x32xf32>
    %c0_82 = arith.constant 0 : index
    %c0_83 = arith.constant 0 : index
    %c0_84 = arith.constant 0 : index
    %143 = vector.load %arg19[%c0_82, %c0_83, %c0_84] : memref<1x8x32xf32, #tpu.memory_space<vmem>>, vector<1x8x32xf32>
    %144 = vector.shape_cast %143 : vector<1x8x32xf32> to vector<8x32xf32>
    %145 = vector.shape_cast %142 : vector<8x32xf32> to vector<1x8x32xf32>
    tpu.vector_store %arg19[%c0_82, %c0_83, %c0_84], %145 {strides = array<i32>} : memref<1x8x32xf32, #tpu.memory_space<vmem>>, vector<1x8x32xf32>,
    return
  }
  func.func @transform_0(%arg0: i32, %arg1: i32) -> (i32, i32, i32) {
    %c0_i32 = arith.constant 0 : i32
    %c0_i32_0 = arith.constant 0 : i32
    %c0_i32_1 = arith.constant 0 : i32
    return %arg0, %c0_i32, %c0_i32_0 : i32, i32, i32
  }
  func.func @transform_1(%arg0: i32, %arg1: i32) -> (i32, i32, i32) {
    %c0_i32 = arith.constant 0 : i32
    %c0_i32_0 = arith.constant 0 : i32
    %c0_i32_1 = arith.constant 0 : i32
    return %arg0, %c0_i32, %c0_i32_0 : i32, i32, i32
  }
  func.func @transform_2(%arg0: i32, %arg1: i32) -> (i32, i32, i32) {
    %c0_i32 = arith.constant 0 : i32
    %c0_i32_0 = arith.constant 0 : i32
    %c0_i32_1 = arith.constant 0 : i32
    return %arg0, %c0_i32, %c0_i32_0 : i32, i32, i32
  }
  func.func @transform_3(%arg0: i32, %arg1: i32) -> (i32, i32, i32) {
    %c0_i32 = arith.constant 0 : i32
    %c0_i32_0 = arith.constant 0 : i32
    %c0_i32_1 = arith.constant 0 : i32
    return %arg0, %c0_i32, %c0_i32_0 : i32, i32, i32
  }
  func.func @transform_4(%arg0: i32, %arg1: i32) -> (i32, i32, i32, i32) {
    %c0_i32 = arith.constant 0 : i32
    %c0_i32_0 = arith.constant 0 : i32
    %c0_i32_1 = arith.constant 0 : i32
    %c0_i32_2 = arith.constant 0 : i32
    return %arg1, %c0_i32, %c0_i32_0, %c0_i32_1 : i32, i32, i32, i32
  }
  func.func @transform_5(%arg0: i32, %arg1: i32) -> (i32, i32, i32, i32) {
    %c0_i32 = arith.constant 0 : i32
    %c0_i32_0 = arith.constant 0 : i32
    %c0_i32_1 = arith.constant 0 : i32
    %c0_i32_2 = arith.constant 0 : i32
    return %arg1, %c0_i32, %c0_i32_0, %c0_i32_1 : i32, i32, i32, i32
  }
  func.func @transform_6(%arg0: i32, %arg1: i32) -> (i32, i32, i32, i32) {
    %c0_i32 = arith.constant 0 : i32
    %c0_i32_0 = arith.constant 0 : i32
    %c0_i32_1 = arith.constant 0 : i32
    %c0_i32_2 = arith.constant 0 : i32
    return %arg1, %c0_i32, %c0_i32_0, %c0_i32_1 : i32, i32, i32, i32
  }
  func.func @transform_7(%arg0: i32, %arg1: i32) -> (i32, i32, i32, i32) {
    %c0_i32 = arith.constant 0 : i32
    %c0_i32_0 = arith.constant 0 : i32
    %c0_i32_1 = arith.constant 0 : i32
    %c0_i32_2 = arith.constant 0 : i32
    return %arg1, %c0_i32, %c0_i32_0, %c0_i32_1 : i32, i32, i32, i32
  }
  func.func @transform_8(%arg0: i32, %arg1: i32) -> (i32, i32, i32) {
    %c0_i32 = arith.constant 0 : i32
    %c0_i32_0 = arith.constant 0 : i32
    %c0_i32_1 = arith.constant 0 : i32
    return %arg1, %c0_i32, %c0_i32_0 : i32, i32, i32
  }
  func.func @transform_9(%arg0: i32, %arg1: i32) -> (i32, i32, i32) {
    %c0_i32 = arith.constant 0 : i32
    %c0_i32_0 = arith.constant 0 : i32
    %c0_i32_1 = arith.constant 0 : i32
    return %arg1, %c0_i32, %c0_i32_0 : i32, i32, i32
  }
  func.func @transform_10(%arg0: i32, %arg1: i32) -> (i32, i32, i32) {
    %c0_i32 = arith.constant 0 : i32
    %c0_i32_0 = arith.constant 0 : i32
    %c0_i32_1 = arith.constant 0 : i32
    return %arg1, %c0_i32, %c0_i32_0 : i32, i32, i32
  }
  func.func @transform_11(%arg0: i32, %arg1: i32) -> (i32, i32, i32) {
    %c0_i32 = arith.constant 0 : i32
    %c0_i32_0 = arith.constant 0 : i32
    %c0_i32_1 = arith.constant 0 : i32
    return %arg1, %c0_i32, %c0_i32_0 : i32, i32, i32
  }
  func.func @transform_12(%arg0: i32, %arg1: i32) -> (i32, i32, i32) {
    %c0_i32 = arith.constant 0 : i32
    %c0_i32_0 = arith.constant 0 : i32
    %c0_i32_1 = arith.constant 0 : i32
    return %arg1, %c0_i32, %c0_i32_0 : i32, i32, i32
  }
  func.func @transform_13(%arg0: i32, %arg1: i32) -> (i32, i32, i32) {
    %c0_i32 = arith.constant 0 : i32
    %c0_i32_0 = arith.constant 0 : i32
    %c0_i32_1 = arith.constant 0 : i32
    return %arg1, %c0_i32, %c0_i32_0 : i32, i32, i32
  }
  func.func @transform_14(%arg0: i32, %arg1: i32) -> (i32, i32, i32) {
    %c0_i32 = arith.constant 0 : i32
    %c0_i32_0 = arith.constant 0 : i32
    %c0_i32_1 = arith.constant 0 : i32
    return %arg1, %c0_i32, %c0_i32_0 : i32, i32, i32
  }
  func.func @transform_15(%arg0: i32, %arg1: i32) -> (i32, i32, i32) {
    %c0_i32 = arith.constant 0 : i32
    %c0_i32_0 = arith.constant 0 : i32
    %c0_i32_1 = arith.constant 0 : i32
    return %arg1, %c0_i32, %c0_i32_0 : i32, i32, i32
  }
  func.func @transform_16(%arg0: i32, %arg1: i32) -> (i32, i32, i32) {
    %c0_i32 = arith.constant 0 : i32
    %c0_i32_0 = arith.constant 0 : i32
    %c0_i32_1 = arith.constant 0 : i32
    return %arg1, %c0_i32, %c0_i32_0 : i32, i32, i32
  }
  func.func @transform_17(%arg0: i32, %arg1: i32) -> (i32, i32, i32) {
    %c0_i32 = arith.constant 0 : i32
    %c0_i32_0 = arith.constant 0 : i32
    %c0_i32_1 = arith.constant 0 : i32
    return %arg0, %c0_i32, %c0_i32_0 : i32, i32, i32
  }
}

</mosaic_0001>

<llo_original>
// kernel: tpu_custom_call.1
$region0: #{tpu_custom_call.1}
  #allocation0 [shape = 'u32[]', space=smem, size = 0x4, offset = 0x4, fixed_abs, tag = 'smem constant byte address 0x4 - core index']
  #allocation1 [shape = 'u32[72,128]{1,0:T(1,128)}', space=vmem, size = 0x9000, scoped, tag = 'internal scratch']
  %s0 = inlined_call_operand.vmem [shape: f32[2,8,32], index: 0, kind: input, shape index: {}]
  %s1 = inlined_call_operand.hbm [shape: f32[2,8,32], index: 1, kind: input, shape index: {}]
  %s2 = inlined_call_operand.vmem [shape: f32[2,8,1], index: 2, kind: input, shape index: {}]
  %s3 = inlined_call_operand.vmem [shape: f32[2,1,8], index: 3, kind: input, shape index: {}]
  %s4 = inlined_call_operand.vmem [shape: f32[2,4,8,32], index: 4, kind: input, shape index: {}]
  %s5 = inlined_call_operand.vmem [shape: f32[2,4,8,32], index: 5, kind: input, shape index: {}]
  %s6 = inlined_call_operand.vmem [shape: f32[2,4,8,32], index: 6, kind: input, shape index: {}]
  %s7 = inlined_call_operand.hbm [shape: f32[2,4,8,32], index: 7, kind: input, shape index: {}]
  %s8 = inlined_call_operand.vmem [shape: f32[2,1,32], index: 8, kind: input, shape index: {}]
  %s9 = inlined_call_operand.vmem [shape: f32[2,1,32], index: 9, kind: input, shape index: {}]
  %s10 = inlined_call_operand.vmem [shape: f32[2,1,32], index: 10, kind: input, shape index: {}]
  %s11 = inlined_call_operand.hbm [shape: f32[2,32,64], index: 11, kind: input, shape index: {}]
  %s12 = inlined_call_operand.vmem [shape: f32[2,1,64], index: 12, kind: input, shape index: {}]
  %s13 = inlined_call_operand.vmem [shape: f32[2,64,32], index: 13, kind: input, shape index: {}]
  %s14 = inlined_call_operand.vmem [shape: f32[2,1,32], index: 14, kind: input, shape index: {}]
  %s15 = inlined_call_operand.vmem [shape: f32[2,1,32], index: 15, kind: input, shape index: {}]
  %s16 = inlined_call_operand.vmem [shape: f32[2,1,32], index: 16, kind: input, shape index: {}]
  %s17 = inlined_call_operand.hbm [shape: f32[2,8,32], index: 17, kind: output, shape index: {}]
  %s18 = sld [smem:[#allocation0]]
  $region117: #{tpu_custom_call.1} parent=0
    _
  %s20 = ssub.s32 1, %s18
  %s21 = scalar_select 0, %s20, %s18
  $region1: #{tpu_custom_call.1} parent=0
    #allocation2 [shape = 'u8[8192]{0}', space=vmem, size = 0x2000, scoped, tag = 'input window, operand 1']
    #allocation3 [shape = 's32[2]{0}', space=sflag, size = 0x8, scoped, tag = 'scoped memory for tpu_custom_call.1']
    #allocation4 [shape = 's32[2]{0}', space=sflag, size = 0x8, scoped, tag = 'scoped memory for tpu_custom_call.1']
    #allocation5 [shape = 'u8[32768]{0}', space=vmem, size = 0x8000, scoped, tag = 'input window, operand 7']
    #allocation6 [shape = 's32[2]{0}', space=sflag, size = 0x8, scoped, tag = 'scoped memory for tpu_custom_call.1']
    #allocation7 [shape = 'u8[32768]{0}', space=vmem, size = 0x8000, scoped, tag = 'input window, operand 11']
    #allocation8 [shape = 'u8[8192]{0}', space=vmem, size = 0x2000, scoped, tag = 'output window, operand 0']
    %22 = vsyncpa [#allocation3], 0
    %s23 = scalar_lea.sflag [#allocation3], 1
    %24 = vsyncpa %s23, 0
    %25 = vsyncpa [#allocation6], 0
    %s26 = scalar_lea.sflag [#allocation6], 1
    %27 = vsyncpa %s26, 0
    %28 = vsyncpa [#allocation4], 0
    %s29 = scalar_lea.sflag [#allocation4], 1
    %30 = vsyncpa %s29, 0
    loop: start=0, step=1, limit=6
    $region2: #{tpu_custom_call.1} parent=1 // loop_pre_header
      _
    $region3: #{tpu_custom_call.1} parent=1 // loop_header
      %s32 = sphi 0, %s36
      %p33 = scmp.ge.s32.totalorder %s32, 6
      %s39 = sphi 0, %s51
      %s40 = sphi 0, %s47
      %s41 = sphi 0, %s39
      %s42 = sphi 0, %s40
      %s43 = sphi 0, %s41
      %s44 = sphi 0, %s42
      %s54 = sphi 0, %s56
      %s57 = sphi 0, %s54
      %s58 = sphi 0, %s57
      %s74 = sphi 0, %s58
      %s80 = sphi 0, %s82
      %s83 = sphi 0, %s80
      %s84 = sphi 0, %s83
      %s100 = sphi 0, %s84
      %s106 = sphi 0, %s108
      %s109 = sphi 0, %s106
      %s110 = sphi 0, %s109
      %s126 = sphi 0, %s110
      %s132 = sphi 0, %s134
      %s135 = sphi 0, %s132
      %s136 = sphi 0, %s135
      %s152 = sphi 0, %s136
      %s158 = sphi 0, %s160
      %s161 = sphi 0, %s158
      %s162 = sphi 0, %s161
      %s178 = sphi 0, %s162
      %s184 = sphi 0, %s186
      %s187 = sphi 0, %s184
      %s188 = sphi 0, %s187
      %s204 = sphi 0, %s188
      %s210 = sphi 0, %s212
      %s213 = sphi 0, %s210
      %s214 = sphi 0, %s213
      %s230 = sphi 0, %s214
      %s236 = sphi 0, %s238
      %s239 = sphi 0, %s236
      %s240 = sphi 0, %s239
      %s256 = sphi 0, %s240
      %s262 = sphi 0, %s264
      %s265 = sphi 0, %s262
      %s266 = sphi 0, %s265
      %s282 = sphi 0, %s266
      %s288 = sphi 0, %s290
      %s291 = sphi 0, %s288
      %s292 = sphi 0, %s291
      %s308 = sphi 0, %s292
      %s314 = sphi 0, %s316
      %s317 = sphi 0, %s314
      %s318 = sphi 0, %s317
      %s334 = sphi 0, %s318
      %s340 = sphi 0, %s342
      %s343 = sphi 0, %s340
      %s344 = sphi 0, %s343
      %s360 = sphi 0, %s344
      %s366 = sphi 0, %s368
      %s369 = sphi 0, %s366
      %s370 = sphi 0, %s369
      %s386 = sphi 0, %s370
      %s392 = sphi 0, %s394
      %s395 = sphi 0, %s392
      %s396 = sphi 0, %s395
      %s412 = sphi 0, %s396
      %s418 = sphi 0, %s420
      %s421 = sphi 0, %s418
      %s422 = sphi 0, %s421
      %s438 = sphi 0, %s422
      %s444 = sphi 0, %s446
      %s447 = sphi 0, %s444
      %s448 = sphi 0, %s447
      %s464 = sphi 0, %s448
      %s470 = sphi 0, %s472
      %s473 = sphi 0, %s470
      %s474 = sphi 0, %s473
      %s490 = sphi 0, %s474
      %s496 = sphi 0, %s498
      %s499 = sphi 0, %s496
      %s500 = sphi 0, %s499
      %s516 = sphi 0, %s500
    $region4: #{tpu_custom_call.1} parent=1 // loop_header_branch
      %35 = sbr.rel (%p33) target = $region8
    $region5: #{tpu_custom_call.1} parent=1 // loop_body
      %s37 = ssub.s32 %s32, 1
      %s38 = ssub.s32 %s32, 2
      %s45 = sadd.s32 1, %s40
      %p46 = scmp.ge.s32.totalorder %s45, 2
      %s47 = scalar_select %p46, 0, %s45
      %s48 = sadd.s32 1, %s39
      %s49 = scalar_select %p46, %s48, %s39
      %p50 = scmp.ge.s32.totalorder %s49, 2
      %s51 = scalar_select %p50, 0, %s49
      %s52 = ssub.s32 %s39, %s51
      %p53 = scmp.eq.s32.totalorder %s52, 0
      %s55 = sadd.s32 %s54, 1
      %s56 = scalar_select %p53, %s54, %s55
      %p59 = pneg %p53
      %p60 = scmp.eq.s32.totalorder %s32, 3
      %p61 = por %p59, %p60
      %p62 = scmp.ne.s32.totalorder %s54, %s57
      %p63 = scmp.eq.s32.totalorder %s32, 0
      %p64 = por %p62, %p63
      %p65 = scmp.ne.s32.totalorder %s54, %s57
      %p66 = scmp.eq.s32.totalorder %s37, 3
      %p67 = por %p65, %p66
      %p68 = scmp.ne.s32.totalorder %s57, %s58
      %p69 = scmp.eq.s32.totalorder %s37, 0
      %p70 = por %p68, %p69
      %p71 = scmp.ne.s32.totalorder %s57, %s58
      %p72 = scmp.eq.s32.totalorder %s38, 3
      %p73 = por %p71, %p72
      %p75 = scmp.ne.s32.totalorder %s58, %s74
      %p76 = scmp.eq.s32.totalorder %s38, 0
      %p77 = por %p75, %p76
      %s78 = ssub.s32 %s39, %s51
      %p79 = scmp.eq.s32.totalorder %s78, 0
      %s81 = sadd.s32 %s80, 1
      %s82 = scalar_select %p79, %s80, %s81
      %p85 = pneg %p79
      %p86 = scmp.eq.s32.totalorder %s32, 3
      %p87 = por %p85, %p86
      %p88 = scmp.ne.s32.totalorder %s80, %s83
      %p89 = scmp.eq.s32.totalorder %s32, 0
      %p90 = por %p88, %p89
      %p91 = scmp.ne.s32.totalorder %s80, %s83
      %p92 = scmp.eq.s32.totalorder %s37, 3
      %p93 = por %p91, %p92
      %p94 = scmp.ne.s32.totalorder %s83, %s84
      %p95 = scmp.eq.s32.totalorder %s37, 0
      %p96 = por %p94, %p95
      %p97 = scmp.ne.s32.totalorder %s83, %s84
      %p98 = scmp.eq.s32.totalorder %s38, 3
      %p99 = por %p97, %p98
      %p101 = scmp.ne.s32.totalorder %s84, %s100
      %p102 = scmp.eq.s32.totalorder %s38, 0
      %p103 = por %p101, %p102
      %s104 = ssub.s32 %s39, %s51
      %p105 = scmp.eq.s32.totalorder %s104, 0
      %s107 = sadd.s32 %s106, 1
      %s108 = scalar_select %p105, %s106, %s107
      %p111 = pneg %p105
      %p112 = scmp.eq.s32.totalorder %s32, 3
      %p113 = por %p111, %p112
      %p114 = scmp.ne.s32.totalorder %s106, %s109
      %p115 = scmp.eq.s32.totalorder %s32, 0
      %p116 = por %p114, %p115
      %p117 = scmp.ne.s32.totalorder %s106, %s109
      %p118 = scmp.eq.s32.totalorder %s37, 3
      %p119 = por %p117, %p118
      %p120 = scmp.ne.s32.totalorder %s109, %s110
      %p121 = scmp.eq.s32.totalorder %s37, 0
      %p122 = por %p120, %p121
      %p123 = scmp.ne.s32.totalorder %s109, %s110
      %p124 = scmp.eq.s32.totalorder %s38, 3
      %p125 = por %p123, %p124
      %p127 = scmp.ne.s32.totalorder %s110, %s126
      %p128 = scmp.eq.s32.totalorder %s38, 0
      %p129 = por %p127, %p128
      %s130 = ssub.s32 %s39, %s51
      %p131 = scmp.eq.s32.totalorder %s130, 0
      %s133 = sadd.s32 %s132, 1
      %s134 = scalar_select %p131, %s132, %s133
      %p137 = pneg %p131
      %p138 = scmp.eq.s32.totalorder %s32, 3
      %p139 = por %p137, %p138
      %p140 = scmp.ne.s32.totalorder %s132, %s135
      %p141 = scmp.eq.s32.totalorder %s32, 0
      %p142 = por %p140, %p141
      %p143 = scmp.ne.s32.totalorder %s132, %s135
      %p144 = scmp.eq.s32.totalorder %s37, 3
      %p145 = por %p143, %p144
      %p146 = scmp.ne.s32.totalorder %s135, %s136
      %p147 = scmp.eq.s32.totalorder %s37, 0
      %p148 = por %p146, %p147
      %p149 = scmp.ne.s32.totalorder %s135, %s136
      %p150 = scmp.eq.s32.totalorder %s38, 3
      %p151 = por %p149, %p150
      %p153 = scmp.ne.s32.totalorder %s136, %s152
      %p154 = scmp.eq.s32.totalorder %s38, 0
      %p155 = por %p153, %p154
      %s156 = ssub.s32 %s40, %s47
      %p157 = scmp.eq.s32.totalorder %s156, 0
      %s159 = sadd.s32 %s158, 1
      %s160 = scalar_select %p157, %s158, %s159
      %p163 = pneg %p157
      %p164 = scmp.eq.s32.totalorder %s32, 3
      %p165 = por %p163, %p164
      %p166 = scmp.ne.s32.totalorder %s158, %s161
      %p167 = scmp.eq.s32.totalorder %s32, 0
      %p168 = por %p166, %p167
      %p169 = scmp.ne.s32.totalorder %s158, %s161
      %p170 = scmp.eq.s32.totalorder %s37, 3
      %p171 = por %p169, %p170
      %p172 = scmp.ne.s32.totalorder %s161, %s162
      %p173 = scmp.eq.s32.totalorder %s37, 0
      %p174 = por %p172, %p173
      %p175 = scmp.ne.s32.totalorder %s161, %s162
      %p176 = scmp.eq.s32.totalorder %s38, 3
      %p177 = por %p175, %p176
      %p179 = scmp.ne.s32.totalorder %s162, %s178
      %p180 = scmp.eq.s32.totalorder %s38, 0
      %p181 = por %p179, %p180
      %s182 = ssub.s32 %s40, %s47
      %p183 = scmp.eq.s32.totalorder %s182, 0
      %s185 = sadd.s32 %s184, 1
      %s186 = scalar_select %p183, %s184, %s185
      %p189 = pneg %p183
      %p190 = scmp.eq.s32.totalorder %s32, 3
      %p191 = por %p189, %p190
      %p192 = scmp.ne.s32.totalorder %s184, %s187
      %p193 = scmp.eq.s32.totalorder %s32, 0
      %p194 = por %p192, %p193
      %p195 = scmp.ne.s32.totalorder %s184, %s187
      %p196 = scmp.eq.s32.totalorder %s37, 3
      %p197 = por %p195, %p196
      %p198 = scmp.ne.s32.totalorder %s187, %s188
      %p199 = scmp.eq.s32.totalorder %s37, 0
      %p200 = por %p198, %p199
      %p201 = scmp.ne.s32.totalorder %s187, %s188
      %p202 = scmp.eq.s32.totalorder %s38, 3
      %p203 = por %p201, %p202
      %p205 = scmp.ne.s32.totalorder %s188, %s204
      %p206 = scmp.eq.s32.totalorder %s38, 0
      %p207 = por %p205, %p206
      %s208 = ssub.s32 %s40, %s47
      %p209 = scmp.eq.s32.totalorder %s208, 0
      %s211 = sadd.s32 %s210, 1
      %s212 = scalar_select %p209, %s210, %s211
      %p215 = pneg %p209
      %p216 = scmp.eq.s32.totalorder %s32, 3
      %p217 = por %p215, %p216
      %p218 = scmp.ne.s32.totalorder %s210, %s213
      %p219 = scmp.eq.s32.totalorder %s32, 0
      %p220 = por %p218, %p219
      %p221 = scmp.ne.s32.totalorder %s210, %s213
      %p222 = scmp.eq.s32.totalorder %s37, 3
      %p223 = por %p221, %p222
      %p224 = scmp.ne.s32.totalorder %s213, %s214
      %p225 = scmp.eq.s32.totalorder %s37, 0
      %p226 = por %p224, %p225
      %p227 = scmp.ne.s32.totalorder %s213, %s214
      %p228 = scmp.eq.s32.totalorder %s38, 3
      %p229 = por %p227, %p228
      %p231 = scmp.ne.s32.totalorder %s214, %s230
      %p232 = scmp.eq.s32.totalorder %s38, 0
      %p233 = por %p231, %p232
      %s234 = ssub.s32 %s40, %s47
      %p235 = scmp.eq.s32.totalorder %s234, 0
      %s237 = sadd.s32 %s236, 1
      %s238 = scalar_select %p235, %s236, %s237
      %p241 = pneg %p235
      %p242 = scmp.eq.s32.totalorder %s32, 3
      %p243 = por %p241, %p242
      %p244 = scmp.ne.s32.totalorder %s236, %s239
      %p245 = scmp.eq.s32.totalorder %s32, 0
      %p246 = por %p244, %p245
      %p247 = scmp.ne.s32.totalorder %s236, %s239
      %p248 = scmp.eq.s32.totalorder %s37, 3
      %p249 = por %p247, %p248
      %p250 = scmp.ne.s32.totalorder %s239, %s240
      %p251 = scmp.eq.s32.totalorder %s37, 0
      %p252 = por %p250, %p251
      %p253 = scmp.ne.s32.totalorder %s239, %s240
      %p254 = scmp.eq.s32.totalorder %s38, 3
      %p255 = por %p253, %p254
      %p257 = scmp.ne.s32.totalorder %s240, %s256
      %p258 = scmp.eq.s32.totalorder %s38, 0
      %p259 = por %p257, %p258
      %s260 = ssub.s32 %s40, %s47
      %p261 = scmp.eq.s32.totalorder %s260, 0
      %s263 = sadd.s32 %s262, 1
      %s264 = scalar_select %p261, %s262, %s263
      %p267 = pneg %p261
      %p268 = scmp.eq.s32.totalorder %s32, 3
      %p269 = por %p267, %p268
      %p270 = scmp.ne.s32.totalorder %s262, %s265
      %p271 = scmp.eq.s32.totalorder %s32, 0
      %p272 = por %p270, %p271
      %p273 = scmp.ne.s32.totalorder %s262, %s265
      %p274 = scmp.eq.s32.totalorder %s37, 3
      %p275 = por %p273, %p274
      %p276 = scmp.ne.s32.totalorder %s265, %s266
      %p277 = scmp.eq.s32.totalorder %s37, 0
      %p278 = por %p276, %p277
      %p279 = scmp.ne.s32.totalorder %s265, %s266
      %p280 = scmp.eq.s32.totalorder %s38, 3
      %p281 = por %p279, %p280
      %p283 = scmp.ne.s32.totalorder %s266, %s282
      %p284 = scmp.eq.s32.totalorder %s38, 0
      %p285 = por %p283, %p284
      %s286 = ssub.s32 %s40, %s47
      %p287 = scmp.eq.s32.totalorder %s286, 0
      %s289 = sadd.s32 %s288, 1
      %s290 = scalar_select %p287, %s288, %s289
      %p293 = pneg %p287
      %p294 = scmp.eq.s32.totalorder %s32, 3
      %p295 = por %p293, %p294
      %p296 = scmp.ne.s32.totalorder %s288, %s291
      %p297 = scmp.eq.s32.totalorder %s32, 0
      %p298 = por %p296, %p297
      %p299 = scmp.ne.s32.totalorder %s288, %s291
      %p300 = scmp.eq.s32.totalorder %s37, 3
      %p301 = por %p299, %p300
      %p302 = scmp.ne.s32.totalorder %s291, %s292
      %p303 = scmp.eq.s32.totalorder %s37, 0
      %p304 = por %p302, %p303
      %p305 = scmp.ne.s32.totalorder %s291, %s292
      %p306 = scmp.eq.s32.totalorder %s38, 3
      %p307 = por %p305, %p306
      %p309 = scmp.ne.s32.totalorder %s292, %s308
      %p310 = scmp.eq.s32.totalorder %s38, 0
      %p311 = por %p309, %p310
      %s312 = ssub.s32 %s40, %s47
      %p313 = scmp.eq.s32.totalorder %s312, 0
      %s315 = sadd.s32 %s314, 1
      %s316 = scalar_select %p313, %s314, %s315
      %p319 = pneg %p313
      %p320 = scmp.eq.s32.totalorder %s32, 3
      %p321 = por %p319, %p320
      %p322 = scmp.ne.s32.totalorder %s314, %s317
      %p323 = scmp.eq.s32.totalorder %s32, 0
      %p324 = por %p322, %p323
      %p325 = scmp.ne.s32.totalorder %s314, %s317
      %p326 = scmp.eq.s32.totalorder %s37, 3
      %p327 = por %p325, %p326
      %p328 = scmp.ne.s32.totalorder %s317, %s318
      %p329 = scmp.eq.s32.totalorder %s37, 0
      %p330 = por %p328, %p329
      %p331 = scmp.ne.s32.totalorder %s317, %s318
      %p332 = scmp.eq.s32.totalorder %s38, 3
      %p333 = por %p331, %p332
      %p335 = scmp.ne.s32.totalorder %s318, %s334
      %p336 = scmp.eq.s32.totalorder %s38, 0
      %p337 = por %p335, %p336
      %s338 = ssub.s32 %s40, %s47
      %p339 = scmp.eq.s32.totalorder %s338, 0
      %s341 = sadd.s32 %s340, 1
      %s342 = scalar_select %p339, %s340, %s341
      %p345 = pneg %p339
      %p346 = scmp.eq.s32.totalorder %s32, 3
      %p347 = por %p345, %p346
      %p348 = scmp.ne.s32.totalorder %s340, %s343
      %p349 = scmp.eq.s32.totalorder %s32, 0
      %p350 = por %p348, %p349
      %p351 = scmp.ne.s32.totalorder %s340, %s343
      %p352 = scmp.eq.s32.totalorder %s37, 3
      %p353 = por %p351, %p352
      %p354 = scmp.ne.s32.totalorder %s343, %s344
      %p355 = scmp.eq.s32.totalorder %s37, 0
      %p356 = por %p354, %p355
      %p357 = scmp.ne.s32.totalorder %s343, %s344
      %p358 = scmp.eq.s32.totalorder %s38, 3
      %p359 = por %p357, %p358
      %p361 = scmp.ne.s32.totalorder %s344, %s360
      %p362 = scmp.eq.s32.totalorder %s38, 0
      %p363 = por %p361, %p362
      %s364 = ssub.s32 %s40, %s47
      %p365 = scmp.eq.s32.totalorder %s364, 0
      %s367 = sadd.s32 %s366, 1
      %s368 = scalar_select %p365, %s366, %s367
      %p371 = pneg %p365
      %p372 = scmp.eq.s32.totalorder %s32, 3
      %p373 = por %p371, %p372
      %p374 = scmp.ne.s32.totalorder %s366, %s369
      %p375 = scmp.eq.s32.totalorder %s32, 0
      %p376 = por %p374, %p375
      %p377 = scmp.ne.s32.totalorder %s366, %s369
      %p378 = scmp.eq.s32.totalorder %s37, 3
      %p379 = por %p377, %p378
      %p380 = scmp.ne.s32.totalorder %s369, %s370
      %p381 = scmp.eq.s32.totalorder %s37, 0
      %p382 = por %p380, %p381
      %p383 = scmp.ne.s32.totalorder %s369, %s370
      %p384 = scmp.eq.s32.totalorder %s38, 3
      %p385 = por %p383, %p384
      %p387 = scmp.ne.s32.totalorder %s370, %s386
      %p388 = scmp.eq.s32.totalorder %s38, 0
      %p389 = por %p387, %p388
      %s390 = ssub.s32 %s40, %s47
      %p391 = scmp.eq.s32.totalorder %s390, 0
      %s393 = sadd.s32 %s392, 1
      %s394 = scalar_select %p391, %s392, %s393
      %p397 = pneg %p391
      %p398 = scmp.eq.s32.totalorder %s32, 3
      %p399 = por %p397, %p398
      %p400 = scmp.ne.s32.totalorder %s392, %s395
      %p401 = scmp.eq.s32.totalorder %s32, 0
      %p402 = por %p400, %p401
      %p403 = scmp.ne.s32.totalorder %s392, %s395
      %p404 = scmp.eq.s32.totalorder %s37, 3
      %p405 = por %p403, %p404
      %p406 = scmp.ne.s32.totalorder %s395, %s396
      %p407 = scmp.eq.s32.totalorder %s37, 0
      %p408 = por %p406, %p407
      %p409 = scmp.ne.s32.totalorder %s395, %s396
      %p410 = scmp.eq.s32.totalorder %s38, 3
      %p411 = por %p409, %p410
      %p413 = scmp.ne.s32.totalorder %s396, %s412
      %p414 = scmp.eq.s32.totalorder %s38, 0
      %p415 = por %p413, %p414
      %s416 = ssub.s32 %s40, %s47
      %p417 = scmp.eq.s32.totalorder %s416, 0
      %s419 = sadd.s32 %s418, 1
      %s420 = scalar_select %p417, %s418, %s419
      %p423 = pneg %p417
      %p424 = scmp.eq.s32.totalorder %s32, 3
      %p425 = por %p423, %p424
      %p426 = scmp.ne.s32.totalorder %s418, %s421
      %p427 = scmp.eq.s32.totalorder %s32, 0
      %p428 = por %p426, %p427
      %p429 = scmp.ne.s32.totalorder %s418, %s421
      %p430 = scmp.eq.s32.totalorder %s37, 3
      %p431 = por %p429, %p430
      %p432 = scmp.ne.s32.totalorder %s421, %s422
      %p433 = scmp.eq.s32.totalorder %s37, 0
      %p434 = por %p432, %p433
      %p435 = scmp.ne.s32.totalorder %s421, %s422
      %p436 = scmp.eq.s32.totalorder %s38, 3
      %p437 = por %p435, %p436
      %p439 = scmp.ne.s32.totalorder %s422, %s438
      %p440 = scmp.eq.s32.totalorder %s38, 0
      %p441 = por %p439, %p440
      %s442 = ssub.s32 %s40, %s47
      %p443 = scmp.eq.s32.totalorder %s442, 0
      %s445 = sadd.s32 %s444, 1
      %s446 = scalar_select %p443, %s444, %s445
      %p449 = pneg %p443
      %p450 = scmp.eq.s32.totalorder %s32, 3
      %p451 = por %p449, %p450
      %p452 = scmp.ne.s32.totalorder %s444, %s447
      %p453 = scmp.eq.s32.totalorder %s32, 0
      %p454 = por %p452, %p453
      %p455 = scmp.ne.s32.totalorder %s444, %s447
      %p456 = scmp.eq.s32.totalorder %s37, 3
      %p457 = por %p455, %p456
      %p458 = scmp.ne.s32.totalorder %s447, %s448
      %p459 = scmp.eq.s32.totalorder %s37, 0
      %p460 = por %p458, %p459
      %p461 = scmp.ne.s32.totalorder %s447, %s448
      %p462 = scmp.eq.s32.totalorder %s38, 3
      %p463 = por %p461, %p462
      %p465 = scmp.ne.s32.totalorder %s448, %s464
      %p466 = scmp.eq.s32.totalorder %s38, 0
      %p467 = por %p465, %p466
      %s468 = ssub.s32 %s40, %s47
      %p469 = scmp.eq.s32.totalorder %s468, 0
      %s471 = sadd.s32 %s470, 1
      %s472 = scalar_select %p469, %s470, %s471
      %p475 = pneg %p469
      %p476 = scmp.eq.s32.totalorder %s32, 3
      %p477 = por %p475, %p476
      %p478 = scmp.ne.s32.totalorder %s470, %s473
      %p479 = scmp.eq.s32.totalorder %s32, 0
      %p480 = por %p478, %p479
      %p481 = scmp.ne.s32.totalorder %s470, %s473
      %p482 = scmp.eq.s32.totalorder %s37, 3
      %p483 = por %p481, %p482
      %p484 = scmp.ne.s32.totalorder %s473, %s474
      %p485 = scmp.eq.s32.totalorder %s37, 0
      %p486 = por %p484, %p485
      %p487 = scmp.ne.s32.totalorder %s473, %s474
      %p488 = scmp.eq.s32.totalorder %s38, 3
      %p489 = por %p487, %p488
      %p491 = scmp.ne.s32.totalorder %s474, %s490
      %p492 = scmp.eq.s32.totalorder %s38, 0
      %p493 = por %p491, %p492
      %s494 = ssub.s32 %s39, %s51
      %p495 = scmp.eq.s32.totalorder %s494, 0
      %s497 = sadd.s32 %s496, 1
      %s498 = scalar_select %p495, %s496, %s497
      %p501 = pneg %p495
      %p502 = scmp.eq.s32.totalorder %s32, 3
      %p503 = por %p501, %p502
      %p504 = scmp.ne.s32.totalorder %s496, %s499
      %p505 = scmp.eq.s32.totalorder %s32, 0
      %p506 = por %p504, %p505
      %p507 = scmp.ne.s32.totalorder %s496, %s499
      %p508 = scmp.eq.s32.totalorder %s37, 3
      %p509 = por %p507, %p508
      %p510 = scmp.ne.s32.totalorder %s499, %s500
      %p511 = scmp.eq.s32.totalorder %s37, 0
      %p512 = por %p510, %p511
      %p513 = scmp.ne.s32.totalorder %s499, %s500
      %p514 = scmp.eq.s32.totalorder %s38, 3
      %p515 = por %p513, %p514
      %p517 = scmp.ne.s32.totalorder %s500, %s516
      %p518 = scmp.eq.s32.totalorder %s38, 0
      %p519 = por %p517, %p518
      %p520 = scmp.le.s32.totalorder 1, %s32
      %p521 = scmp.lt.s32.totalorder %s32, 5
      %p522 = pnand %p520, %p521
      %p523 = pneg %p522
      // Predicated region
      $region9: #{tpu_custom_call.1} parent=5 // pred_check
        _
      $region10: #{tpu_custom_call.1} parent=5 // pred_check_branch
        %525 = sbr.rel (%p522) target = $region12
      $region11: #{tpu_custom_call.1} parent=5 // pred_region
        %s526 = ssub.s32 %s32, 1
      $region12: #{tpu_custom_call.1} parent=5 // pred_fallthru
        _
      %p527 = scmp.lt.s32.totalorder %s32, 4
      // Predicated region
      $region13: #{tpu_custom_call.1} parent=5 // pred_check
        %p528 = pneg %p527
      $region14: #{tpu_custom_call.1} parent=5 // pred_check_branch
        %530 = sbr.rel (%p528) target = $region16
      $region15: #{tpu_custom_call.1} parent=5 // pred_region
        // Predicated region
        $region17: #{tpu_custom_call.1} parent=15 // pred_check
          %p531 = pneg %p64
        $region18: #{tpu_custom_call.1} parent=15 // pred_check_branch
          %533 = sbr.rel (%p531) target = $region20
        $region19: #{tpu_custom_call.1} parent=15 // pred_region
          %p534 = scmp.lt.s32.totalorder %s39, 1
          %s535 = scalar_select %p534, %s39, 1
          %s536 = smul.addr %s535, 8
          %s537 = scalar_lea.vmem %s0, %s536
        $region20: #{tpu_custom_call.1} parent=15 // pred_fallthru
          _
        // Predicated region
        $region21: #{tpu_custom_call.1} parent=15 // pred_check
          %p538 = pneg %p90
        $region22: #{tpu_custom_call.1} parent=15 // pred_check_branch
          %540 = sbr.rel (%p538) target = $region24
        $region23: #{tpu_custom_call.1} parent=15 // pred_region
          %s541 = sand.u32 %s80, 1
          %s542 = scalar_lea.sflag [#allocation3], %s541
          %s543 = sand.u32 %s80, 1
          %s544 = smul.addr %s543, 8
          %s545 = scalar_lea.vmem [#allocation2], %s544
          %547 = vsyncadd %s542, 0
          %s548 = smul.addr %s39, 8
          %s549 = scalar_lea.hbm %s1, %s548
          %s551 = sshll.u32 %s549, 4
          %s552 = int_to_ptr.hbm [resolvable:$true] %s551
          %s553 = sshll.u32 %s545, 4
          %s554 = int_to_ptr.vmem [resolvable:$true] %s553
          %556 = dma.hbm_to_vmem [thread:$0]  %s552, 128, %s554, %s542
        $region24: #{tpu_custom_call.1} parent=15 // pred_fallthru
          _
        // Predicated region
        $region25: #{tpu_custom_call.1} parent=15 // pred_check
          %p557 = pneg %p116
        $region26: #{tpu_custom_call.1} parent=15 // pred_check_branch
          %559 = sbr.rel (%p557) target = $region28
        $region27: #{tpu_custom_call.1} parent=15 // pred_region
          %p560 = scmp.lt.s32.totalorder %s39, 1
          %s561 = scalar_select %p560, %s39, 1
          %s562 = smul.addr %s561, 8
          %s563 = scalar_lea.vmem %s2, %s562
        $region28: #{tpu_custom_call.1} parent=15 // pred_fallthru
          _
        // Predicated region
        $region29: #{tpu_custom_call.1} parent=15 // pred_check
          %p564 = pneg %p142
        $region30: #{tpu_custom_call.1} parent=15 // pred_check_branch
          %566 = sbr.rel (%p564) target = $region32
        $region31: #{tpu_custom_call.1} parent=15 // pred_region
          %p567 = scmp.lt.s32.totalorder %s39, 1
          %s568 = scalar_select %p567, %s39, 1
          %s569 = scalar_lea.vmem %s3, %s568
        $region32: #{tpu_custom_call.1} parent=15 // pred_fallthru
          _
        // Predicated region
        $region33: #{tpu_custom_call.1} parent=15 // pred_check
          %p570 = pneg %p168
        $region34: #{tpu_custom_call.1} parent=15 // pred_check_branch
          %572 = sbr.rel (%p570) target = $region36
        $region35: #{tpu_custom_call.1} parent=15 // pred_region
          %p573 = scmp.lt.s32.totalorder %s40, 1
          %s574 = scalar_select %p573, %s40, 1
          %s575 = smul.addr %s574, 4
          %s576 = smul.addr %s575, 8
          %s577 = scalar_lea.vmem %s4, %s576
        $region36: #{tpu_custom_call.1} parent=15 // pred_fallthru
          _
        // Predicated region
        $region37: #{tpu_custom_call.1} parent=15 // pred_check
          %p578 = pneg %p194
        $region38: #{tpu_custom_call.1} parent=15 // pred_check_branch
          %580 = sbr.rel (%p578) target = $region40
        $region39: #{tpu_custom_call.1} parent=15 // pred_region
          %p581 = scmp.lt.s32.totalorder %s40, 1
          %s582 = scalar_select %p581, %s40, 1
          %s583 = smul.addr %s582, 4
          %s584 = smul.addr %s583, 8
          %s585 = scalar_lea.vmem %s5, %s584
        $region40: #{tpu_custom_call.1} parent=15 // pred_fallthru
          _
        // Predicated region
        $region41: #{tpu_custom_call.1} parent=15 // pred_check
          %p586 = pneg %p220
        $region42: #{tpu_custom_call.1} parent=15 // pred_check_branch
          %588 = sbr.rel (%p586) target = $region44
        $region43: #{tpu_custom_call.1} parent=15 // pred_region
          %p589 = scmp.lt.s32.totalorder %s40, 1
          %s590 = scalar_select %p589, %s40, 1
          %s591 = smul.addr %s590, 4
          %s592 = smul.addr %s591, 8
          %s593 = scalar_lea.vmem %s6, %s592
        $region44: #{tpu_custom_call.1} parent=15 // pred_fallthru
          _
        // Predicated region
        $region45: #{tpu_custom_call.1} parent=15 // pred_check
          %p594 = pneg %p246
        $region46: #{tpu_custom_call.1} parent=15 // pred_check_branch
          %596 = sbr.rel (%p594) target = $region48
        $region47: #{tpu_custom_call.1} parent=15 // pred_region
          %s597 = sand.u32 %s32, 1
          %s598 = scalar_lea.sflag [#allocation6], %s597
          %s599 = sand.u32 %s236, 1
          %s600 = smul.addr %s599, 32
          %s601 = scalar_lea.vmem [#allocation5], %s600
          %603 = vsyncadd %s598, 0
          %s604 = smul.addr %s40, 4
          %s605 = smul.addr %s604, 8
          %s606 = scalar_lea.hbm %s7, %s605
          %s607 = sshll.u32 %s606, 4
          %s608 = int_to_ptr.hbm [resolvable:$true] %s607
          %s609 = sshll.u32 %s601, 4
          %s610 = int_to_ptr.vmem [resolvable:$true] %s609
          %615 = dma.hbm_to_vmem [thread:$0]  %s608, 512, %s610, %s598, 128, 128, 8
        $region48: #{tpu_custom_call.1} parent=15 // pred_fallthru
          _
        // Predicated region
        $region49: #{tpu_custom_call.1} parent=15 // pred_check
          %p616 = pneg %p272
        $region50: #{tpu_custom_call.1} parent=15 // pred_check_branch
          %618 = sbr.rel (%p616) target = $region52
        $region51: #{tpu_custom_call.1} parent=15 // pred_region
          %p619 = scmp.lt.s32.totalorder %s40, 1
          %s620 = scalar_select %p619, %s40, 1
          %s621 = scalar_lea.vmem %s8, %s620
        $region52: #{tpu_custom_call.1} parent=15 // pred_fallthru
          _
        // Predicated region
        $region53: #{tpu_custom_call.1} parent=15 // pred_check
          %p622 = pneg %p298
        $region54: #{tpu_custom_call.1} parent=15 // pred_check_branch
          %624 = sbr.rel (%p622) target = $region56
        $region55: #{tpu_custom_call.1} parent=15 // pred_region
          %p625 = scmp.lt.s32.totalorder %s40, 1
          %s626 = scalar_select %p625, %s40, 1
          %s627 = scalar_lea.vmem %s9, %s626
        $region56: #{tpu_custom_call.1} parent=15 // pred_fallthru
          _
        // Predicated region
        $region57: #{tpu_custom_call.1} parent=15 // pred_check
          %p628 = pneg %p324
        $region58: #{tpu_custom_call.1} parent=15 // pred_check_branch
          %630 = sbr.rel (%p628) target = $region60
        $region59: #{tpu_custom_call.1} parent=15 // pred_region
          %p631 = scmp.lt.s32.totalorder %s40, 1
          %s632 = scalar_select %p631, %s40, 1
          %s633 = scalar_lea.vmem %s10, %s632
        $region60: #{tpu_custom_call.1} parent=15 // pred_fallthru
          _
        // Predicated region
        $region61: #{tpu_custom_call.1} parent=15 // pred_check
          %p634 = pneg %p350
        $region62: #{tpu_custom_call.1} parent=15 // pred_check_branch
          %636 = sbr.rel (%p634) target = $region64
        $region63: #{tpu_custom_call.1} parent=15 // pred_region
          %s637 = sand.u32 %s32, 1
          %s638 = scalar_lea.sflag [#allocation6], %s637
          %s639 = sand.u32 %s340, 1
          %s640 = smul.addr %s639, 32
          %s641 = scalar_lea.vmem [#allocation7], %s640
          %643 = vsyncadd %s638, 0
          %s644 = smul.addr %s40, 4
          %s645 = smul.addr %s644, 8
          %s646 = scalar_lea.hbm %s11, %s645
          %s647 = sshll.u32 %s646, 4
          %s648 = int_to_ptr.hbm [resolvable:$true] %s647
          %s649 = sshll.u32 %s641, 4
          %s650 = int_to_ptr.vmem [resolvable:$true] %s649
          %655 = dma.hbm_to_vmem [thread:$0]  %s648, 512, %s650, %s638, 128, 128, 8
        $region64: #{tpu_custom_call.1} parent=15 // pred_fallthru
          _
        // Predicated region
        $region65: #{tpu_custom_call.1} parent=15 // pred_check
          %p656 = pneg %p376
        $region66: #{tpu_custom_call.1} parent=15 // pred_check_branch
          %658 = sbr.rel (%p656) target = $region68
        $region67: #{tpu_custom_call.1} parent=15 // pred_region
          %p659 = scmp.lt.s32.totalorder %s40, 1
          %s660 = scalar_select %p659, %s40, 1
          %s661 = scalar_lea.vmem %s12, %s660
        $region68: #{tpu_custom_call.1} parent=15 // pred_fallthru
          _
        // Predicated region
        $region69: #{tpu_custom_call.1} parent=15 // pred_check
          %p662 = pneg %p402
        $region70: #{tpu_custom_call.1} parent=15 // pred_check_branch
          %664 = sbr.rel (%p662) target = $region72
        $region71: #{tpu_custom_call.1} parent=15 // pred_region
          %p665 = scmp.lt.s32.totalorder %s40, 1
          %s666 = scalar_select %p665, %s40, 1
          %s667 = smul.addr %s666, 8
          %s668 = smul.addr %s667, 8
          %s669 = scalar_lea.vmem %s13, %s668
        $region72: #{tpu_custom_call.1} parent=15 // pred_fallthru
          _
        // Predicated region
        $region73: #{tpu_custom_call.1} parent=15 // pred_check
          %p670 = pneg %p428
        $region74: #{tpu_custom_call.1} parent=15 // pred_check_branch
          %672 = sbr.rel (%p670) target = $region76
        $region75: #{tpu_custom_call.1} parent=15 // pred_region
          %p673 = scmp.lt.s32.totalorder %s40, 1
          %s674 = scalar_select %p673, %s40, 1
          %s675 = scalar_lea.vmem %s14, %s674
        $region76: #{tpu_custom_call.1} parent=15 // pred_fallthru
          _
        // Predicated region
        $region77: #{tpu_custom_call.1} parent=15 // pred_check
          %p676 = pneg %p454
        $region78: #{tpu_custom_call.1} parent=15 // pred_check_branch
          %678 = sbr.rel (%p676) target = $region80
        $region79: #{tpu_custom_call.1} parent=15 // pred_region
          %p679 = scmp.lt.s32.totalorder %s40, 1
          %s680 = scalar_select %p679, %s40, 1
          %s681 = scalar_lea.vmem %s15, %s680
        $region80: #{tpu_custom_call.1} parent=15 // pred_fallthru
          _
        // Predicated region
        $region81: #{tpu_custom_call.1} parent=15 // pred_check
          %p682 = pneg %p480
        $region82: #{tpu_custom_call.1} parent=15 // pred_check_branch
          %684 = sbr.rel (%p682) target = $region84
        $region83: #{tpu_custom_call.1} parent=15 // pred_region
          %p685 = scmp.lt.s32.totalorder %s40, 1
          %s686 = scalar_select %p685, %s40, 1
          %s687 = scalar_lea.vmem %s16, %s686
        $region84: #{tpu_custom_call.1} parent=15 // pred_fallthru
          _
      $region16: #{tpu_custom_call.1} parent=5 // pred_fallthru
        _
      %p688 = scmp.le.s32.totalorder 1, %s32
      %p689 = scmp.lt.s32.totalorder %s32, 5
      %p690 = pnand %p688, %p689
      %p691 = pneg %p690
      // Predicated region
      $region85: #{tpu_custom_call.1} parent=5 // pred_check
        _
      $region86: #{tpu_custom_call.1} parent=5 // pred_check_branch
        %693 = sbr.rel (%p690) target = $region88
      $region87: #{tpu_custom_call.1} parent=5 // pred_region
        %s694 = ssub.s32 %s32, 1
        %s695 = sand.u32 %s83, 1
        %s696 = scalar_lea.sflag [#allocation3], %s695
        %s697 = sand.u32 %s83, 1
        %s698 = smul.addr %s697, 8
        %s699 = scalar_lea.vmem [#allocation2], %s698
        // Predicated region
        $region89: #{tpu_custom_call.1} parent=87 // pred_check
          %p700 = pneg %p96
        $region90: #{tpu_custom_call.1} parent=87 // pred_check_branch
          %702 = sbr.rel (%p700) target = $region92
        $region91: #{tpu_custom_call.1} parent=87 // pred_region
          %704 = dma.done %s696, 128
        $region92: #{tpu_custom_call.1} parent=87 // pred_fallthru
          _
        %s705 = sand.u32 %s37, 1
        %s706 = scalar_lea.sflag [#allocation6], %s705
        %s707 = sand.u32 %s239, 1
        %s708 = smul.addr %s707, 32
        %s709 = scalar_lea.vmem [#allocation5], %s708
        // Predicated region
        $region93: #{tpu_custom_call.1} parent=87 // pred_check
          %p710 = pneg %p252
        $region94: #{tpu_custom_call.1} parent=87 // pred_check_branch
          %712 = sbr.rel (%p710) target = $region96
        $region95: #{tpu_custom_call.1} parent=87 // pred_region
          %714 = dma.done %s706, 512
        $region96: #{tpu_custom_call.1} parent=87 // pred_fallthru
          _
        %s715 = sand.u32 %s37, 1
        %s716 = scalar_lea.sflag [#allocation6], %s715
        %s717 = sand.u32 %s343, 1
        %s718 = smul.addr %s717, 32
        %s719 = scalar_lea.vmem [#allocation7], %s718
        // Predicated region
        $region97: #{tpu_custom_call.1} parent=87 // pred_check
          %p720 = pneg %p356
        $region98: #{tpu_custom_call.1} parent=87 // pred_check_branch
          %722 = sbr.rel (%p720) target = $region100
        $region99: #{tpu_custom_call.1} parent=87 // pred_region
          %724 = dma.done %s716, 512
        $region100: #{tpu_custom_call.1} parent=87 // pred_fallthru
          _
        %p725 = scmp.lt.s32.totalorder %s41, 1
        %s726 = scalar_select %p725, %s41, 1
        %s727 = smul.addr %s726, 8
        %s728 = scalar_lea.vmem %s0, %s727
        %p729 = pneg %p70
        %p730 = pneg %p67
        %s731 = sand.u32 %s83, 1
        %s732 = scalar_lea.sflag [#allocation3], %s731
        %s733 = sand.u32 %s83, 1
        %s734 = smul.addr %s733, 8
        %s735 = scalar_lea.vmem [#allocation2], %s734
        %p736 = pneg %p96
        %p737 = pneg %p93
        %p738 = scmp.lt.s32.totalorder %s41, 1
        %s739 = scalar_select %p738, %s41, 1
        %s740 = smul.addr %s739, 8
        %s741 = scalar_lea.vmem %s2, %s740
        %p742 = pneg %p122
        %p743 = pneg %p119
        %p744 = scmp.lt.s32.totalorder %s41, 1
        %s745 = scalar_select %p744, %s41, 1
        %s746 = scalar_lea.vmem %s3, %s745
        %p747 = pneg %p148
        %p748 = pneg %p145
        %p749 = scmp.lt.s32.totalorder %s42, 1
        %s750 = scalar_select %p749, %s42, 1
        %s751 = smul.addr %s750, 4
        %s752 = smul.addr %s751, 8
        %s753 = scalar_lea.vmem %s4, %s752
        %p754 = pneg %p174
        %p755 = pneg %p171
        %p756 = scmp.lt.s32.totalorder %s42, 1
        %s757 = scalar_select %p756, %s42, 1
        %s758 = smul.addr %s757, 4
        %s759 = smul.addr %s758, 8
        %s760 = scalar_lea.vmem %s5, %s759
        %p761 = pneg %p200
        %p762 = pneg %p197
        %p763 = scmp.lt.s32.totalorder %s42, 1
        %s764 = scalar_select %p763, %s42, 1
        %s765 = smul.addr %s764, 4
        %s766 = smul.addr %s765, 8
        %s767 = scalar_lea.vmem %s6, %s766
        %p768 = pneg %p226
        %p769 = pneg %p223
        %s770 = sand.u32 %s37, 1
        %s771 = scalar_lea.sflag [#allocation6], %s770
        %s772 = sand.u32 %s239, 1
        %s773 = smul.addr %s772, 32
        %s774 = scalar_lea.vmem [#allocation5], %s773
        %p775 = pneg %p252
        %p776 = pneg %p249
        %p777 = scmp.lt.s32.totalorder %s42, 1
        %s778 = scalar_select %p777, %s42, 1
        %s779 = scalar_lea.vmem %s8, %s778
        %p780 = pneg %p278
        %p781 = pneg %p275
        %p782 = scmp.lt.s32.totalorder %s42, 1
        %s783 = scalar_select %p782, %s42, 1
        %s784 = scalar_lea.vmem %s9, %s783
        %p785 = pneg %p304
        %p786 = pneg %p301
        %p787 = scmp.lt.s32.totalorder %s42, 1
        %s788 = scalar_select %p787, %s42, 1
        %s789 = scalar_lea.vmem %s10, %s788
        %p790 = pneg %p330
        %p791 = pneg %p327
        %s792 = sand.u32 %s37, 1
        %s793 = scalar_lea.sflag [#allocation6], %s792
        %s794 = sand.u32 %s343, 1
        %s795 = smul.addr %s794, 32
        %s796 = scalar_lea.vmem [#allocation7], %s795
        %p797 = pneg %p356
        %p798 = pneg %p353
        %p799 = scmp.lt.s32.totalorder %s42, 1
        %s800 = scalar_select %p799, %s42, 1
        %s801 = scalar_lea.vmem %s12, %s800
        %p802 = pneg %p382
        %p803 = pneg %p379
        %p804 = scmp.lt.s32.totalorder %s42, 1
        %s805 = scalar_select %p804, %s42, 1
        %s806 = smul.addr %s805, 8
        %s807 = smul.addr %s806, 8
        %s808 = scalar_lea.vmem %s13, %s807
        %p809 = pneg %p408
        %p810 = pneg %p405
        %p811 = scmp.lt.s32.totalorder %s42, 1
        %s812 = scalar_select %p811, %s42, 1
        %s813 = scalar_lea.vmem %s14, %s812
        %p814 = pneg %p434
        %p815 = pneg %p431
        %p816 = scmp.lt.s32.totalorder %s42, 1
        %s817 = scalar_select %p816, %s42, 1
        %s818 = scalar_lea.vmem %s15, %s817
        %p819 = pneg %p460
        %p820 = pneg %p457
        %p821 = scmp.lt.s32.totalorder %s42, 1
        %s822 = scalar_select %p821, %s42, 1
        %s823 = scalar_lea.vmem %s16, %s822
        %p824 = pneg %p486
        %p825 = pneg %p483
        %p826 = pneg %p512
        %p827 = pneg %p509
        %s828 = sand.u32 %s499, 1
        %s829 = scalar_lea.sflag [#allocation4], %s828
        %s830 = sand.u32 %s499, 1
        %s831 = smul.addr %s830, 8
        %s832 = scalar_lea.vmem [#allocation8], %s831
        %p833 = scmp.lt.s32.totalorder %s41, 1
        %s834 = scalar_select %p833, %s41, 1
        %s835 = smul.addr %s834, 8
        %s836 = scalar_lea.vmem %s0, %s835
        %p837 = scmp.lt.s32.totalorder %s41, 1
        %s838 = scalar_select %p837, %s41, 1
        %s839 = smul.addr %s838, 8
        %s840 = scalar_lea.vmem %s2, %s839
        %p841 = scmp.lt.s32.totalorder %s41, 1
        %s842 = scalar_select %p841, %s41, 1
        %s843 = scalar_lea.vmem %s3, %s842
        %p844 = scmp.lt.s32.totalorder %s42, 1
        %s845 = scalar_select %p844, %s42, 1
        %s846 = smul.addr %s845, 4
        %s847 = smul.addr %s846, 8
        %s848 = scalar_lea.vmem %s4, %s847
        %p849 = scmp.lt.s32.totalorder %s42, 1
        %s850 = scalar_select %p849, %s42, 1
        %s851 = smul.addr %s850, 4
        %s852 = smul.addr %s851, 8
        %s853 = scalar_lea.vmem %s5, %s852
        %p854 = scmp.lt.s32.totalorder %s42, 1
        %s855 = scalar_select %p854, %s42, 1
        %s856 = smul.addr %s855, 4
        %s857 = smul.addr %s856, 8
        %s858 = scalar_lea.vmem %s6, %s857
        %p859 = scmp.lt.s32.totalorder %s42, 1
        %s860 = scalar_select %p859, %s42, 1
        %s861 = scalar_lea.vmem %s8, %s860
        %p862 = scmp.lt.s32.totalorder %s42, 1
        %s863 = scalar_select %p862, %s42, 1
        %s864 = scalar_lea.vmem %s9, %s863
        %p865 = scmp.lt.s32.totalorder %s42, 1
        %s866 = scalar_select %p865, %s42, 1
        %s867 = scalar_lea.vmem %s10, %s866
        %p868 = scmp.lt.s32.totalorder %s42, 1
        %s869 = scalar_select %p868, %s42, 1
        %s870 = scalar_lea.vmem %s12, %s869
        %p871 = scmp.lt.s32.totalorder %s42, 1
        %s872 = scalar_select %p871, %s42, 1
        %s873 = smul.addr %s872, 8
        %s874 = smul.addr %s873, 8
        %s875 = scalar_lea.vmem %s13, %s874
        %p876 = scmp.lt.s32.totalorder %s42, 1
        %s877 = scalar_select %p876, %s42, 1
        %s878 = scalar_lea.vmem %s14, %s877
        %p879 = scmp.lt.s32.totalorder %s42, 1
        %s880 = scalar_select %p879, %s42, 1
        %s881 = scalar_lea.vmem %s15, %s880
        %p882 = scmp.lt.s32.totalorder %s42, 1
        %s883 = scalar_select %p882, %s42, 1
        %s884 = scalar_lea.vmem %s16, %s883
        %p885 = scmp.eq.s32.totalorder %s42, 0
        // Predicated region
        $region101: #{tpu_custom_call.1} parent=87 // pred_check
          %p886 = pneg %p885
        $region102: #{tpu_custom_call.1} parent=87 // pred_check_branch
          %888 = sbr.rel (%p886) target = $region104
        $region103: #{tpu_custom_call.1} parent=87 // pred_region
          %v889 = vld [vmem:[%s836] sm:$0xff]
          %vm890 = vcmask 261120
          %891 = vst.msk [vmem:[%s832] sm:$0xff] %vm890, %v889
        $region104: #{tpu_custom_call.1} parent=87 // pred_fallthru
          _
        %v892 = vld [vmem:[%s832] sm:$0xff]
        %v893 = vld [vmem:[%s699] sm:$0xff]
        %v894 = vadd.f32 %v892, %v893
        %v895 = vld [vmem:[%s840] sm:$0xff]
        %v896 = vlaneseq
        %v897 = vshrl.u32 %v896, 7
        %v898 = vlaneseq
        %v899 = vand.u32 %v898, 127
        %v900 = vld [vmem:[%s843] sm:$0x1]
        %vm901 = vcmp.eq.f32.partialorder %v900, 0.0
        %vm902 = vcmp.gt.s32.totalorder %v899, %v897
        %v903 = vsel %vm901, 1, 0
        %v904 = vperm.slane %v903, 0
        %vm905 = vcmp.eq.s32.totalorder %v904, 1
        %vm906 = vmor %vm902, %vm905
        %v907 = vld [vmem:[%s848] sm:$0xff]
        %v908 = vld [vmem:[%s848 + $0x8] sm:$0xff]
        %v909 = vld [vmem:[%s848 + $0x10] sm:$0xff]
        %v910 = vld [vmem:[%s848 + $0x18] sm:$0xff]
        %v911 = vld [vmem:[%s853] sm:$0xff]
        %v912 = vld [vmem:[%s853 + $0x8] sm:$0xff]
        %v913 = vld [vmem:[%s853 + $0x10] sm:$0xff]
        %v914 = vld [vmem:[%s853 + $0x18] sm:$0xff]
        %v915 = vld [vmem:[%s858] sm:$0xff]
        %v916 = vld [vmem:[%s858 + $0x8] sm:$0xff]
        %v917 = vld [vmem:[%s858 + $0x10] sm:$0xff]
        %v918 = vld [vmem:[%s858 + $0x18] sm:$0xff]
        %v919 = vld [vmem:[%s709] sm:$0xff]
        %v920 = vld [vmem:[%s709 + $0x8] sm:$0xff]
        %v921 = vld [vmem:[%s709 + $0x10] sm:$0xff]
        %v922 = vld [vmem:[%s709 + $0x18] sm:$0xff]
        %vm923 = vcmask 261120
        %v925 = vsel %vm923, %v894, 0
        %v928 = vsel %vm923, %v907, 0
        %930 = vmatpush.xpose.msra.mxu0 0.0
        %931 = vmatpush.xpose.msra.mxu0 0.0
        %932 = vmatpush.xpose.msra.mxu0 0.0
        %933 = vmatpush.xpose.msra.mxu0 0.0
        %934 = vmatpush.xpose.msra.mxu0 0.0
        %935 = vmatpush.xpose.msra.mxu0 0.0
        %936 = vmatpush.xpose.msra.mxu0 0.0
        %937 = vmatpush.xpose.msra.mxu0 0.0
        %938 = vmatpush.xpose.msra.mxu0 0.0
        %939 = vmatpush.xpose.msra.mxu0 0.0
        %940 = vmatpush.xpose.msra.mxu0 0.0
        %941 = vmatpush.xpose.msra.mxu0 0.0
        %942 = vmatpush.xpose.msra.mxu0 0.0
        %943 = vmatpush.xpose.msra.mxu0 0.0
        %944 = vmatpush.xpose.msra.mxu0 0.0
        %945 = vmatpush.xpose.msra.mxu0 %v928
        %946 = vmatmul.f32.gmra.mxu0 %v925
        %v947 = vpop.f32.mrf.mxu0
        %v948 = vadd.f32 0.0, %v947
        %949 = vdwg.mxu0
        %v951 = vsel %vm923, %v908, 0
        %953 = vmatpush.xpose.msra.mxu0 0.0
        %954 = vmatpush.xpose.msra.mxu0 0.0
        %955 = vmatpush.xpose.msra.mxu0 0.0
        %956 = vmatpush.xpose.msra.mxu0 0.0
        %957 = vmatpush.xpose.msra.mxu0 0.0
        %958 = vmatpush.xpose.msra.mxu0 0.0
        %959 = vmatpush.xpose.msra.mxu0 0.0
        %960 = vmatpush.xpose.msra.mxu0 0.0
        %961 = vmatpush.xpose.msra.mxu0 0.0
        %962 = vmatpush.xpose.msra.mxu0 0.0
        %963 = vmatpush.xpose.msra.mxu0 0.0
        %964 = vmatpush.xpose.msra.mxu0 0.0
        %965 = vmatpush.xpose.msra.mxu0 0.0
        %966 = vmatpush.xpose.msra.mxu0 0.0
        %967 = vmatpush.xpose.msra.mxu0 0.0
        %968 = vmatpush.xpose.msra.mxu0 %v951
        %969 = vmatmul.f32.gmra.mxu0 %v925
        %v970 = vpop.f32.mrf.mxu0
        %v971 = vadd.f32 0.0, %v970
        %972 = vdwg.mxu0
        %v974 = vsel %vm923, %v909, 0
        %976 = vmatpush.xpose.msra.mxu0 0.0
        %977 = vmatpush.xpose.msra.mxu0 0.0
        %978 = vmatpush.xpose.msra.mxu0 0.0
        %979 = vmatpush.xpose.msra.mxu0 0.0
        %980 = vmatpush.xpose.msra.mxu0 0.0
        %981 = vmatpush.xpose.msra.mxu0 0.0
        %982 = vmatpush.xpose.msra.mxu0 0.0
        %983 = vmatpush.xpose.msra.mxu0 0.0
        %984 = vmatpush.xpose.msra.mxu0 0.0
        %985 = vmatpush.xpose.msra.mxu0 0.0
        %986 = vmatpush.xpose.msra.mxu0 0.0
        %987 = vmatpush.xpose.msra.mxu0 0.0
        %988 = vmatpush.xpose.msra.mxu0 0.0
        %989 = vmatpush.xpose.msra.mxu0 0.0
        %990 = vmatpush.xpose.msra.mxu0 0.0
        %991 = vmatpush.xpose.msra.mxu0 %v974
        %992 = vmatmul.f32.gmra.mxu0 %v925
        %v993 = vpop.f32.mrf.mxu0
        %v994 = vadd.f32 0.0, %v993
        %995 = vdwg.mxu0
        %v997 = vsel %vm923, %v910, 0
        %999 = vmatpush.xpose.msra.mxu0 0.0
        %1000 = vmatpush.xpose.msra.mxu0 0.0
        %1001 = vmatpush.xpose.msra.mxu0 0.0
        %1002 = vmatpush.xpose.msra.mxu0 0.0
        %1003 = vmatpush.xpose.msra.mxu0 0.0
        %1004 = vmatpush.xpose.msra.mxu0 0.0
        %1005 = vmatpush.xpose.msra.mxu0 0.0
        %1006 = vmatpush.xpose.msra.mxu0 0.0
        %1007 = vmatpush.xpose.msra.mxu0 0.0
        %1008 = vmatpush.xpose.msra.mxu0 0.0
        %1009 = vmatpush.xpose.msra.mxu0 0.0
        %1010 = vmatpush.xpose.msra.mxu0 0.0
        %1011 = vmatpush.xpose.msra.mxu0 0.0
        %1012 = vmatpush.xpose.msra.mxu0 0.0
        %1013 = vmatpush.xpose.msra.mxu0 0.0
        %1014 = vmatpush.xpose.msra.mxu0 %v997
        %1015 = vmatmul.f32.gmra.mxu0 %v925
        %v1016 = vpop.f32.mrf.mxu0
        %v1017 = vadd.f32 0.0, %v1016
        %1018 = vdwg.mxu0
        %v1020 = vsel %vm923, %v911, 0
        %1022 = vmatpush.xpose.msra.mxu0 0.0
        %1023 = vmatpush.xpose.msra.mxu0 0.0
        %1024 = vmatpush.xpose.msra.mxu0 0.0
        %1025 = vmatpush.xpose.msra.mxu0 0.0
        %1026 = vmatpush.xpose.msra.mxu0 0.0
        %1027 = vmatpush.xpose.msra.mxu0 0.0
        %1028 = vmatpush.xpose.msra.mxu0 0.0
        %1029 = vmatpush.xpose.msra.mxu0 0.0
        %1030 = vmatpush.xpose.msra.mxu0 0.0
        %1031 = vmatpush.xpose.msra.mxu0 0.0
        %1032 = vmatpush.xpose.msra.mxu0 0.0
        %1033 = vmatpush.xpose.msra.mxu0 0.0
        %1034 = vmatpush.xpose.msra.mxu0 0.0
        %1035 = vmatpush.xpose.msra.mxu0 0.0
        %1036 = vmatpush.xpose.msra.mxu0 0.0
        %1037 = vmatpush.xpose.msra.mxu0 %v1020
        %1038 = vmatmul.f32.gmra.mxu0 %v925
        %v1039 = vpop.f32.mrf.mxu0
        %v1040 = vadd.f32 0.0, %v1039
        %1041 = vdwg.mxu0
        %v1043 = vsel %vm923, %v912, 0
        %1045 = vmatpush.xpose.msra.mxu0 0.0
        %1046 = vmatpush.xpose.msra.mxu0 0.0
        %1047 = vmatpush.xpose.msra.mxu0 0.0
        %1048 = vmatpush.xpose.msra.mxu0 0.0
        %1049 = vmatpush.xpose.msra.mxu0 0.0
        %1050 = vmatpush.xpose.msra.mxu0 0.0
        %1051 = vmatpush.xpose.msra.mxu0 0.0
        %1052 = vmatpush.xpose.msra.mxu0 0.0
        %1053 = vmatpush.xpose.msra.mxu0 0.0
        %1054 = vmatpush.xpose.msra.mxu0 0.0
        %1055 = vmatpush.xpose.msra.mxu0 0.0
        %1056 = vmatpush.xpose.msra.mxu0 0.0
        %1057 = vmatpush.xpose.msra.mxu0 0.0
        %1058 = vmatpush.xpose.msra.mxu0 0.0
        %1059 = vmatpush.xpose.msra.mxu0 0.0
        %1060 = vmatpush.xpose.msra.mxu0 %v1043
        %1061 = vmatmul.f32.gmra.mxu0 %v925
        %v1062 = vpop.f32.mrf.mxu0
        %v1063 = vadd.f32 0.0, %v1062
        %1064 = vdwg.mxu0
        %v1066 = vsel %vm923, %v913, 0
        %1068 = vmatpush.xpose.msra.mxu0 0.0
        %1069 = vmatpush.xpose.msra.mxu0 0.0
        %1070 = vmatpush.xpose.msra.mxu0 0.0
        %1071 = vmatpush.xpose.msra.mxu0 0.0
        %1072 = vmatpush.xpose.msra.mxu0 0.0
        %1073 = vmatpush.xpose.msra.mxu0 0.0
        %1074 = vmatpush.xpose.msra.mxu0 0.0
        %1075 = vmatpush.xpose.msra.mxu0 0.0
        %1076 = vmatpush.xpose.msra.mxu0 0.0
        %1077 = vmatpush.xpose.msra.mxu0 0.0
        %1078 = vmatpush.xpose.msra.mxu0 0.0
        %1079 = vmatpush.xpose.msra.mxu0 0.0
        %1080 = vmatpush.xpose.msra.mxu0 0.0
        %1081 = vmatpush.xpose.msra.mxu0 0.0
        %1082 = vmatpush.xpose.msra.mxu0 0.0
        %1083 = vmatpush.xpose.msra.mxu0 %v1066
        %1084 = vmatmul.f32.gmra.mxu0 %v925
        %v1085 = vpop.f32.mrf.mxu0
        %v1086 = vadd.f32 0.0, %v1085
        %1087 = vdwg.mxu0
        %v1089 = vsel %vm923, %v914, 0
        %1091 = vmatpush.xpose.msra.mxu0 0.0
        %1092 = vmatpush.xpose.msra.mxu0 0.0
        %1093 = vmatpush.xpose.msra.mxu0 0.0
        %1094 = vmatpush.xpose.msra.mxu0 0.0
        %1095 = vmatpush.xpose.msra.mxu0 0.0
        %1096 = vmatpush.xpose.msra.mxu0 0.0
        %1097 = vmatpush.xpose.msra.mxu0 0.0
        %1098 = vmatpush.xpose.msra.mxu0 0.0
        %1099 = vmatpush.xpose.msra.mxu0 0.0
        %1100 = vmatpush.xpose.msra.mxu0 0.0
        %1101 = vmatpush.xpose.msra.mxu0 0.0
        %1102 = vmatpush.xpose.msra.mxu0 0.0
        %1103 = vmatpush.xpose.msra.mxu0 0.0
        %1104 = vmatpush.xpose.msra.mxu0 0.0
        %1105 = vmatpush.xpose.msra.mxu0 0.0
        %1106 = vmatpush.xpose.msra.mxu0 %v1089
        %1107 = vmatmul.f32.gmra.mxu0 %v925
        %v1108 = vpop.f32.mrf.mxu0
        %v1109 = vadd.f32 0.0, %v1108
        %1110 = vdwg.mxu0
        %v1112 = vsel %vm923, %v915, 0
        %1114 = vmatpush.xpose.msra.mxu0 0.0
        %1115 = vmatpush.xpose.msra.mxu0 0.0
        %1116 = vmatpush.xpose.msra.mxu0 0.0
        %1117 = vmatpush.xpose.msra.mxu0 0.0
        %1118 = vmatpush.xpose.msra.mxu0 0.0
        %1119 = vmatpush.xpose.msra.mxu0 0.0
        %1120 = vmatpush.xpose.msra.mxu0 0.0
        %1121 = vmatpush.xpose.msra.mxu0 0.0
        %1122 = vmatpush.xpose.msra.mxu0 0.0
        %1123 = vmatpush.xpose.msra.mxu0 0.0
        %1124 = vmatpush.xpose.msra.mxu0 0.0
        %1125 = vmatpush.xpose.msra.mxu0 0.0
        %1126 = vmatpush.xpose.msra.mxu0 0.0
        %1127 = vmatpush.xpose.msra.mxu0 0.0
        %1128 = vmatpush.xpose.msra.mxu0 0.0
        %1129 = vmatpush.xpose.msra.mxu0 %v1112
        %1130 = vmatmul.f32.gmra.mxu0 %v925
        %v1131 = vpop.f32.mrf.mxu0
        %v1132 = vadd.f32 0.0, %v1131
        %1133 = vdwg.mxu0
        %v1135 = vsel %vm923, %v916, 0
        %1137 = vmatpush.xpose.msra.mxu0 0.0
        %1138 = vmatpush.xpose.msra.mxu0 0.0
        %1139 = vmatpush.xpose.msra.mxu0 0.0
        %1140 = vmatpush.xpose.msra.mxu0 0.0
        %1141 = vmatpush.xpose.msra.mxu0 0.0
        %1142 = vmatpush.xpose.msra.mxu0 0.0
        %1143 = vmatpush.xpose.msra.mxu0 0.0
        %1144 = vmatpush.xpose.msra.mxu0 0.0
        %1145 = vmatpush.xpose.msra.mxu0 0.0
        %1146 = vmatpush.xpose.msra.mxu0 0.0
        %1147 = vmatpush.xpose.msra.mxu0 0.0
        %1148 = vmatpush.xpose.msra.mxu0 0.0
        %1149 = vmatpush.xpose.msra.mxu0 0.0
        %1150 = vmatpush.xpose.msra.mxu0 0.0
        %1151 = vmatpush.xpose.msra.mxu0 0.0
        %1152 = vmatpush.xpose.msra.mxu0 %v1135
        %1153 = vmatmul.f32.gmra.mxu0 %v925
        %v1154 = vpop.f32.mrf.mxu0
        %v1155 = vadd.f32 0.0, %v1154
        %1156 = vdwg.mxu0
        %v1158 = vsel %vm923, %v917, 0
        %1160 = vmatpush.xpose.msra.mxu0 0.0
        %1161 = vmatpush.xpose.msra.mxu0 0.0
        %1162 = vmatpush.xpose.msra.mxu0 0.0
        %1163 = vmatpush.xpose.msra.mxu0 0.0
        %1164 = vmatpush.xpose.msra.mxu0 0.0
        %1165 = vmatpush.xpose.msra.mxu0 0.0
        %1166 = vmatpush.xpose.msra.mxu0 0.0
        %1167 = vmatpush.xpose.msra.mxu0 0.0
        %1168 = vmatpush.xpose.msra.mxu0 0.0
        %1169 = vmatpush.xpose.msra.mxu0 0.0
        %1170 = vmatpush.xpose.msra.mxu0 0.0
        %1171 = vmatpush.xpose.msra.mxu0 0.0
        %1172 = vmatpush.xpose.msra.mxu0 0.0
        %1173 = vmatpush.xpose.msra.mxu0 0.0
        %1174 = vmatpush.xpose.msra.mxu0 0.0
        %1175 = vmatpush.xpose.msra.mxu0 %v1158
        %1176 = vmatmul.f32.gmra.mxu0 %v925
        %v1177 = vpop.f32.mrf.mxu0
        %v1178 = vadd.f32 0.0, %v1177
        %1179 = vdwg.mxu0
        %v1181 = vsel %vm923, %v918, 0
        %1183 = vmatpush.xpose.msra.mxu0 0.0
        %1184 = vmatpush.xpose.msra.mxu0 0.0
        %1185 = vmatpush.xpose.msra.mxu0 0.0
        %1186 = vmatpush.xpose.msra.mxu0 0.0
        %1187 = vmatpush.xpose.msra.mxu0 0.0
        %1188 = vmatpush.xpose.msra.mxu0 0.0
        %1189 = vmatpush.xpose.msra.mxu0 0.0
        %1190 = vmatpush.xpose.msra.mxu0 0.0
        %1191 = vmatpush.xpose.msra.mxu0 0.0
        %1192 = vmatpush.xpose.msra.mxu0 0.0
        %1193 = vmatpush.xpose.msra.mxu0 0.0
        %1194 = vmatpush.xpose.msra.mxu0 0.0
        %1195 = vmatpush.xpose.msra.mxu0 0.0
        %1196 = vmatpush.xpose.msra.mxu0 0.0
        %1197 = vmatpush.xpose.msra.mxu0 0.0
        %1198 = vmatpush.xpose.msra.mxu0 %v1181
        %1199 = vmatmul.f32.gmra.mxu0 %v925
        %v1200 = vpop.f32.mrf.mxu0
        %v1201 = vadd.f32 0.0, %v1200
        %1202 = vdwg.mxu0
        %v1203 = vmul.f32 %v948, 0.35355338
        %v1204 = vmul.f32 %v971, 0.35355338
        %v1205 = vmul.f32 %v994, 0.35355338
        %v1206 = vmul.f32 %v1017, 0.35355338
        %vm1207 = vcmask 64512
        %v1209 = vsel %vm1207, %v1203, 0
        %v1212 = vsel %vm1207, %v1040, 0
        %1214 = vmatpush.xpose.msra.mxu0 0.0
        %1215 = vmatpush.xpose.msra.mxu0 0.0
        %1216 = vmatpush.xpose.msra.mxu0 0.0
        %1217 = vmatpush.xpose.msra.mxu0 0.0
        %1218 = vmatpush.xpose.msra.mxu0 0.0
        %1219 = vmatpush.xpose.msra.mxu0 0.0
        %1220 = vmatpush.xpose.msra.mxu0 0.0
        %1221 = vmatpush.xpose.msra.mxu0 0.0
        %1222 = vmatpush.xpose.msra.mxu0 0.0
        %1223 = vmatpush.xpose.msra.mxu0 0.0
        %1224 = vmatpush.xpose.msra.mxu0 0.0
        %1225 = vmatpush.xpose.msra.mxu0 0.0
        %1226 = vmatpush.xpose.msra.mxu0 0.0
        %1227 = vmatpush.xpose.msra.mxu0 0.0
        %1228 = vmatpush.xpose.msra.mxu0 0.0
        %1229 = vmatpush.xpose.msra.mxu0 %v1212
        %1230 = vmatmul.f32.gmra.mxu0 %v1209
        %v1231 = vpop.f32.mrf.mxu0
        %v1232 = vadd.f32 0.0, %v1231
        %1233 = vdwg.mxu0
        %v1235 = vsel %vm1207, %v1204, 0
        %v1238 = vsel %vm1207, %v1063, 0
        %1240 = vmatpush.xpose.msra.mxu0 0.0
        %1241 = vmatpush.xpose.msra.mxu0 0.0
        %1242 = vmatpush.xpose.msra.mxu0 0.0
        %1243 = vmatpush.xpose.msra.mxu0 0.0
        %1244 = vmatpush.xpose.msra.mxu0 0.0
        %1245 = vmatpush.xpose.msra.mxu0 0.0
        %1246 = vmatpush.xpose.msra.mxu0 0.0
        %1247 = vmatpush.xpose.msra.mxu0 0.0
        %1248 = vmatpush.xpose.msra.mxu0 0.0
        %1249 = vmatpush.xpose.msra.mxu0 0.0
        %1250 = vmatpush.xpose.msra.mxu0 0.0
        %1251 = vmatpush.xpose.msra.mxu0 0.0
        %1252 = vmatpush.xpose.msra.mxu0 0.0
        %1253 = vmatpush.xpose.msra.mxu0 0.0
        %1254 = vmatpush.xpose.msra.mxu0 0.0
        %1255 = vmatpush.xpose.msra.mxu0 %v1238
        %1256 = vmatmul.f32.gmra.mxu0 %v1235
        %v1257 = vpop.f32.mrf.mxu0
        %v1258 = vadd.f32 0.0, %v1257
        %1259 = vdwg.mxu0
        %v1261 = vsel %vm1207, %v1205, 0
        %v1264 = vsel %vm1207, %v1086, 0
        %1266 = vmatpush.xpose.msra.mxu0 0.0
        %1267 = vmatpush.xpose.msra.mxu0 0.0
        %1268 = vmatpush.xpose.msra.mxu0 0.0
        %1269 = vmatpush.xpose.msra.mxu0 0.0
        %1270 = vmatpush.xpose.msra.mxu0 0.0
        %1271 = vmatpush.xpose.msra.mxu0 0.0
        %1272 = vmatpush.xpose.msra.mxu0 0.0
        %1273 = vmatpush.xpose.msra.mxu0 0.0
        %1274 = vmatpush.xpose.msra.mxu0 0.0
        %1275 = vmatpush.xpose.msra.mxu0 0.0
        %1276 = vmatpush.xpose.msra.mxu0 0.0
        %1277 = vmatpush.xpose.msra.mxu0 0.0
        %1278 = vmatpush.xpose.msra.mxu0 0.0
        %1279 = vmatpush.xpose.msra.mxu0 0.0
        %1280 = vmatpush.xpose.msra.mxu0 0.0
        %1281 = vmatpush.xpose.msra.mxu0 %v1264
        %1282 = vmatmul.f32.gmra.mxu0 %v1261
        %v1283 = vpop.f32.mrf.mxu0
        %v1284 = vadd.f32 0.0, %v1283
        %1285 = vdwg.mxu0
        %v1287 = vsel %vm1207, %v1206, 0
        %v1290 = vsel %vm1207, %v1109, 0
        %1292 = vmatpush.xpose.msra.mxu0 0.0
        %1293 = vmatpush.xpose.msra.mxu0 0.0
        %1294 = vmatpush.xpose.msra.mxu0 0.0
        %1295 = vmatpush.xpose.msra.mxu0 0.0
        %1296 = vmatpush.xpose.msra.mxu0 0.0
        %1297 = vmatpush.xpose.msra.mxu0 0.0
        %1298 = vmatpush.xpose.msra.mxu0 0.0
        %1299 = vmatpush.xpose.msra.mxu0 0.0
        %1300 = vmatpush.xpose.msra.mxu0 0.0
        %1301 = vmatpush.xpose.msra.mxu0 0.0
        %1302 = vmatpush.xpose.msra.mxu0 0.0
        %1303 = vmatpush.xpose.msra.mxu0 0.0
        %1304 = vmatpush.xpose.msra.mxu0 0.0
        %1305 = vmatpush.xpose.msra.mxu0 0.0
        %1306 = vmatpush.xpose.msra.mxu0 0.0
        %1307 = vmatpush.xpose.msra.mxu0 %v1290
        %1308 = vmatmul.f32.gmra.mxu0 %v1287
        %v1309 = vpop.f32.mrf.mxu0
        %v1310 = vadd.f32 0.0, %v1309
        %1311 = vdwg.mxu0
        %v1312 = vsel %vm906, 1, 0
        %vm1313 = vcmp.eq.s32.totalorder %v1312, 1
        %v1314 = vsel %vm1313, -1e+09, %v1232
        %v1315 = vsel %vm1313, -1e+09, %v1258
        %v1316 = vsel %vm1313, -1e+09, %v1284
        %v1317 = vsel %vm1313, -1e+09, %v1310
        %v1318 = vsel %vm1207, %v1314, -inf
        %1319 = vmax.xlane.f32.xlu0 %v1318
        %v1320 = vpop.xlane.xlu0 %1319
        %v1321 = vsel %vm1207, %v1315, -inf
        %1322 = vmax.xlane.f32.xlu0 %v1321
        %v1323 = vpop.xlane.xlu0 %1322
        %v1324 = vsel %vm1207, %v1316, -inf
        %1325 = vmax.xlane.f32.xlu0 %v1324
        %v1326 = vpop.xlane.xlu0 %1325
        %v1327 = vsel %vm1207, %v1317, -inf
        %1328 = vmax.xlane.f32.xlu0 %v1327
        %v1329 = vpop.xlane.xlu0 %1328
        %v1330 = vsub.f32 %v1314, %v1320
        %v1331 = vsub.f32 %v1315, %v1323
        %v1332 = vsub.f32 %v1316, %v1326
        %v1333 = vsub.f32 %v1317, %v1329
        %v1334 = vmul.f32 %v1330, 1.442695
        %v1335 = vpow.pop %v1334
        %v1336 = vmul.f32 %v1331, 1.442695
        %v1337 = vpow.pop %v1336
        %v1338 = vmul.f32 %v1332, 1.442695
        %v1339 = vpow.pop %v1338
        %v1340 = vmul.f32 %v1333, 1.442695
        %v1341 = vpow.pop %v1340
        %v1342 = vsel %vm1207, %v1335, 0.0
        %1343 = vadd.xlane.f32.xlu0 %v1342
        %v1344 = vpop.xlane.xlu0 %1343
        %v1345 = vsel %vm1207, %v1337, 0.0
        %1346 = vadd.xlane.f32.xlu0 %v1345
        %v1347 = vpop.xlane.xlu0 %1346
        %v1348 = vsel %vm1207, %v1339, 0.0
        %1349 = vadd.xlane.f32.xlu0 %v1348
        %v1350 = vpop.xlane.xlu0 %1349
        %v1351 = vsel %vm1207, %v1341, 0.0
        %1352 = vadd.xlane.f32.xlu0 %v1351
        %v1353 = vpop.xlane.xlu0 %1352
        %v1354 = vrcp.pop %v1344
        %v1355 = vrcp.pop %v1347
        %v1356 = vrcp.pop %v1350
        %v1357 = vrcp.pop %v1353
        %v1358 = vmul.f32 %v1335, %v1354
        %v1359 = vmul.f32 %v1337, %v1355
        %v1360 = vmul.f32 %v1339, %v1356
        %v1361 = vmul.f32 %v1341, %v1357
        %v1363 = vsel %vm1207, %v1358, 0
        %1365 = vmatpush.msra.mxu0 0.0
        %1366 = vmatpush.msra.mxu0 0.0
        %1367 = vmatpush.msra.mxu0 0.0
        %1368 = vmatpush.msra.mxu0 0.0
        %1369 = vmatpush.msra.mxu0 0.0
        %1370 = vmatpush.msra.mxu0 0.0
        %1371 = vmatpush.msra.mxu0 0.0
        %1372 = vmatpush.msra.mxu0 0.0
        %1373 = vmatpush.msra.mxu0 0.0
        %1374 = vmatpush.msra.mxu0 0.0
        %1375 = vmatpush.msra.mxu0 0.0
        %1376 = vmatpush.msra.mxu0 0.0
        %1377 = vmatpush.msra.mxu0 0.0
        %1378 = vmatpush.msra.mxu0 0.0
        %1379 = vmatpush.msra.mxu0 0.0
        %1380 = vmatpush.msra.mxu0 %v1132
        %1381 = vmatmul.f32.gmra.mxu0 %v1363
        %v1382 = vpop.f32.mrf.mxu0
        %v1383 = vadd.f32 0.0, %v1382
        %1384 = vdwg.mxu0
        %v1386 = vsel %vm1207, %v1359, 0
        %1388 = vmatpush.msra.mxu0 0.0
        %1389 = vmatpush.msra.mxu0 0.0
        %1390 = vmatpush.msra.mxu0 0.0
        %1391 = vmatpush.msra.mxu0 0.0
        %1392 = vmatpush.msra.mxu0 0.0
        %1393 = vmatpush.msra.mxu0 0.0
        %1394 = vmatpush.msra.mxu0 0.0
        %1395 = vmatpush.msra.mxu0 0.0
        %1396 = vmatpush.msra.mxu0 0.0
        %1397 = vmatpush.msra.mxu0 0.0
        %1398 = vmatpush.msra.mxu0 0.0
        %1399 = vmatpush.msra.mxu0 0.0
        %1400 = vmatpush.msra.mxu0 0.0
        %1401 = vmatpush.msra.mxu0 0.0
        %1402 = vmatpush.msra.mxu0 0.0
        %1403 = vmatpush.msra.mxu0 %v1155
        %1404 = vmatmul.f32.gmra.mxu0 %v1386
        %v1405 = vpop.f32.mrf.mxu0
        %v1406 = vadd.f32 0.0, %v1405
        %1407 = vdwg.mxu0
        %v1409 = vsel %vm1207, %v1360, 0
        %1411 = vmatpush.msra.mxu0 0.0
        %1412 = vmatpush.msra.mxu0 0.0
        %1413 = vmatpush.msra.mxu0 0.0
        %1414 = vmatpush.msra.mxu0 0.0
        %1415 = vmatpush.msra.mxu0 0.0
        %1416 = vmatpush.msra.mxu0 0.0
        %1417 = vmatpush.msra.mxu0 0.0
        %1418 = vmatpush.msra.mxu0 0.0
        %1419 = vmatpush.msra.mxu0 0.0
        %1420 = vmatpush.msra.mxu0 0.0
        %1421 = vmatpush.msra.mxu0 0.0
        %1422 = vmatpush.msra.mxu0 0.0
        %1423 = vmatpush.msra.mxu0 0.0
        %1424 = vmatpush.msra.mxu0 0.0
        %1425 = vmatpush.msra.mxu0 0.0
        %1426 = vmatpush.msra.mxu0 %v1178
        %1427 = vmatmul.f32.gmra.mxu0 %v1409
        %v1428 = vpop.f32.mrf.mxu0
        %v1429 = vadd.f32 0.0, %v1428
        %1430 = vdwg.mxu0
        %v1432 = vsel %vm1207, %v1361, 0
        %1434 = vmatpush.msra.mxu0 0.0
        %1435 = vmatpush.msra.mxu0 0.0
        %1436 = vmatpush.msra.mxu0 0.0
        %1437 = vmatpush.msra.mxu0 0.0
        %1438 = vmatpush.msra.mxu0 0.0
        %1439 = vmatpush.msra.mxu0 0.0
        %1440 = vmatpush.msra.mxu0 0.0
        %1441 = vmatpush.msra.mxu0 0.0
        %1442 = vmatpush.msra.mxu0 0.0
        %1443 = vmatpush.msra.mxu0 0.0
        %1444 = vmatpush.msra.mxu0 0.0
        %1445 = vmatpush.msra.mxu0 0.0
        %1446 = vmatpush.msra.mxu0 0.0
        %1447 = vmatpush.msra.mxu0 0.0
        %1448 = vmatpush.msra.mxu0 0.0
        %1449 = vmatpush.msra.mxu0 %v1201
        %1450 = vmatmul.f32.gmra.mxu0 %v1432
        %v1451 = vpop.f32.mrf.mxu0
        %v1452 = vadd.f32 0.0, %v1451
        %1453 = vdwg.mxu0
        %v1455 = vsel %vm1207, %v1383, 0
        %1457 = vmatpush.msra.mxu0 0.0
        %1458 = vmatpush.msra.mxu0 0.0
        %1459 = vmatpush.msra.mxu0 0.0
        %1460 = vmatpush.msra.mxu0 0.0
        %1461 = vmatpush.msra.mxu0 0.0
        %1462 = vmatpush.msra.mxu0 0.0
        %1463 = vmatpush.msra.mxu0 0.0
        %1464 = vmatpush.msra.mxu0 0.0
        %1465 = vmatpush.msra.mxu0 0.0
        %1466 = vmatpush.msra.mxu0 0.0
        %1467 = vmatpush.msra.mxu0 0.0
        %1468 = vmatpush.msra.mxu0 0.0
        %1469 = vmatpush.msra.mxu0 0.0
        %1470 = vmatpush.msra.mxu0 0.0
        %1471 = vmatpush.msra.mxu0 0.0
        %1472 = vmatpush.msra.mxu0 %v919
        %1473 = vmatmul.f32.gmra.mxu0 %v1455
        %v1474 = vpop.f32.mrf.mxu0
        %v1475 = vadd.f32 0.0, %v1474
        %1476 = vdwg.mxu0
        %v1478 = vsel %vm1207, %v1406, 0
        %1480 = vmatpush.msra.mxu0 0.0
        %1481 = vmatpush.msra.mxu0 0.0
        %1482 = vmatpush.msra.mxu0 0.0
        %1483 = vmatpush.msra.mxu0 0.0
        %1484 = vmatpush.msra.mxu0 0.0
        %1485 = vmatpush.msra.mxu0 0.0
        %1486 = vmatpush.msra.mxu0 0.0
        %1487 = vmatpush.msra.mxu0 0.0
        %1488 = vmatpush.msra.mxu0 0.0
        %1489 = vmatpush.msra.mxu0 0.0
        %1490 = vmatpush.msra.mxu0 0.0
        %1491 = vmatpush.msra.mxu0 0.0
        %1492 = vmatpush.msra.mxu0 0.0
        %1493 = vmatpush.msra.mxu0 0.0
        %1494 = vmatpush.msra.mxu0 0.0
        %1495 = vmatpush.msra.mxu0 %v920
        %1496 = vmatmul.f32.gmra.mxu0 %v1478
        %v1497 = vpop.f32.mrf.mxu0
        %v1498 = vadd.f32 0.0, %v1497
        %1499 = vdwg.mxu0
        %v1501 = vsel %vm1207, %v1429, 0
        %1503 = vmatpush.msra.mxu0 0.0
        %1504 = vmatpush.msra.mxu0 0.0
        %1505 = vmatpush.msra.mxu0 0.0
        %1506 = vmatpush.msra.mxu0 0.0
        %1507 = vmatpush.msra.mxu0 0.0
        %1508 = vmatpush.msra.mxu0 0.0
        %1509 = vmatpush.msra.mxu0 0.0
        %1510 = vmatpush.msra.mxu0 0.0
        %1511 = vmatpush.msra.mxu0 0.0
        %1512 = vmatpush.msra.mxu0 0.0
        %1513 = vmatpush.msra.mxu0 0.0
        %1514 = vmatpush.msra.mxu0 0.0
        %1515 = vmatpush.msra.mxu0 0.0
        %1516 = vmatpush.msra.mxu0 0.0
        %1517 = vmatpush.msra.mxu0 0.0
        %1518 = vmatpush.msra.mxu0 %v921
        %1519 = vmatmul.f32.gmra.mxu0 %v1501
        %v1520 = vpop.f32.mrf.mxu0
        %v1521 = vadd.f32 0.0, %v1520
        %1522 = vdwg.mxu0
        %v1524 = vsel %vm1207, %v1452, 0
        %1526 = vmatpush.msra.mxu0 0.0
        %1527 = vmatpush.msra.mxu0 0.0
        %1528 = vmatpush.msra.mxu0 0.0
        %1529 = vmatpush.msra.mxu0 0.0
        %1530 = vmatpush.msra.mxu0 0.0
        %1531 = vmatpush.msra.mxu0 0.0
        %1532 = vmatpush.msra.mxu0 0.0
        %1533 = vmatpush.msra.mxu0 0.0
        %1534 = vmatpush.msra.mxu0 0.0
        %1535 = vmatpush.msra.mxu0 0.0
        %1536 = vmatpush.msra.mxu0 0.0
        %1537 = vmatpush.msra.mxu0 0.0
        %1538 = vmatpush.msra.mxu0 0.0
        %1539 = vmatpush.msra.mxu0 0.0
        %1540 = vmatpush.msra.mxu0 0.0
        %1541 = vmatpush.msra.mxu0 %v922
        %1542 = vmatmul.f32.gmra.mxu0 %v1524
        %v1543 = vpop.f32.mrf.mxu0
        %v1544 = vadd.f32 0.0, %v1543
        %1545 = vdwg.mxu0
        %v1546 = vsel %vm923, %v1475, 0.0
        %v1547 = vsel %vm923, %v1498, 0.0
        %v1548 = vadd.f32 %v1546, %v1547
        %v1549 = vsel %vm923, %v1521, 0.0
        %v1550 = vadd.f32 %v1548, %v1549
        %v1551 = vsel %vm923, %v1544, 0.0
        %v1552 = vadd.f32 %v1550, %v1551
        %v1553 = vld [vmem:[%s861] sm:$0x1]
        %v1555 = vperm.slane %v1553, 0
        %v1557 = vadd.f32 %v1552, %v1555
        %v1558 = vadd.f32 %v1557, %v894
        %v1559 = vld [vmem:[%s864] sm:$0x1]
        %v1560 = vld [vmem:[%s867] sm:$0x1]
        %v1561 = vsel %vm923, %v1558, 0.0
        %1562 = vadd.xlane.f32.xlu0 %v1561
        %v1563 = vpop.xlane.xlu0 %1562
        %v1564 = vrcp.pop 32.0
        %v1565 = vmul.f32 32.0, %v1564
        %v1566 = vsub.f32 1.0, %v1565
        %v1567 = vmul.f32 %v1564, %v1566
        %v1568 = vadd.f32 %v1564, %v1567
        %vm1569 = vweird.f32 %v1564
        %v1570 = vsel %vm1569, %v1564, %v1568
        %v1571 = vmul.f32 %v1563, %v1570
        %v1572 = vsub.f32 %v1558, %v1571
        %v1573 = vmul.f32 %v1572, %v1572
        %v1574 = vsel %vm923, %v1573, 0.0
        %1575 = vadd.xlane.f32.xlu0 %v1574
        %v1576 = vpop.xlane.xlu0 %1575
        %v1577 = vmul.f32 %v1576, %v1570
        %v1578 = vadd.f32 %v1577, 1e-06
        %v1579 = vrsqrt.pop %v1578
        %v1580 = vmul.f32 %v1579, %v1578
        %v1581 = vmul.f32 %v1580, %v1579
        %v1582 = vmul.f32 0.5, %v1581
        %v1583 = vsub.f32 1.5, %v1582
        %v1584 = vmul.f32 %v1579, %v1583
        %vm1585 = vweird.f32 %v1578
        %vm1586 = vweird.f32 %v1579
        %vm1587 = vmor %vm1585, %vm1586
        %v1588 = vsel %vm1587, %v1579, %v1584
        %v1589 = vmul.f32 %v1572, %v1588
        %v1591 = vperm.slane %v1559, 0
        %v1593 = vmul.f32 %v1589, %v1591
        %v1595 = vperm.slane %v1560, 0
        %v1597 = vadd.f32 %v1593, %v1595
        %1599 = vset.pattern.permute.xlu0 0
        %1600 = vperm.xlu0 %1599, %v895
        %v1601 = vpop.permute.xlu0 %1600
        %v1603 = vmul.f32 %v1597, %v1601
        %v1604 = vld [vmem:[%s719] sm:$0xff]
        %v1605 = vld [vmem:[%s719 + $0x8] sm:$0xff]
        %v1606 = vld [vmem:[%s719 + $0x10] sm:$0xff]
        %v1607 = vld [vmem:[%s719 + $0x18] sm:$0xff]
        %v1608 = vld [vmem:[%s870] sm:$0x1]
        %v1610 = vperm.slane %v1608, 0
        %v1613 = vsel %vm923, %v1603, 0
        %1615 = vmatpush.msra.mxu0 0.0
        %1616 = vmatpush.msra.mxu0 0.0
        %1617 = vmatpush.msra.mxu0 0.0
        %1618 = vmatpush.msra.mxu0 0.0
        %1619 = vmatpush.msra.mxu0 0.0
        %1620 = vmatpush.msra.mxu0 0.0
        %1621 = vmatpush.msra.mxu0 0.0
        %1622 = vmatpush.msra.mxu0 0.0
        %1623 = vmatpush.msra.mxu0 0.0
        %1624 = vmatpush.msra.mxu0 0.0
        %1625 = vmatpush.msra.mxu0 0.0
        %1626 = vmatpush.msra.mxu0 0.0
        %1627 = vmatpush.msra.mxu0 %v1607
        %1628 = vmatpush.msra.mxu0 %v1606
        %1629 = vmatpush.msra.mxu0 %v1605
        %1630 = vmatpush.msra.mxu0 %v1604
        %1631 = vmatmul.f32.gmra.mxu0 %v1613
        %v1632 = vpop.f32.mrf.mxu0
        %v1633 = vadd.f32 %v1610, %v1632
        %1634 = vdwg.mxu0
        %v1635 = vmul.f32 %v1633, %v1633
        %v1636 = vmul.f32 %v1633, %v1635
        %v1637 = vmul.f32 %v1636, 0.044715
        %v1638 = vadd.f32 %v1633, %v1637
        %v1639 = vmul.f32 %v1638, 0.7978846
        %v1640 = vtanh.pop %v1639
        %v1641 = vadd.f32 %v1640, 1.0
        %v1642 = vmul.f32 %v1641, 0.5
        %v1643 = vmul.f32 %v1633, %v1642
        %v1644 = vld [vmem:[%s875] sm:$0xff]
        %v1645 = vld [vmem:[%s875 + $0x8] sm:$0xff]
        %v1646 = vld [vmem:[%s875 + $0x10] sm:$0xff]
        %v1647 = vld [vmem:[%s875 + $0x18] sm:$0xff]
        %v1648 = vld [vmem:[%s875 + $0x20] sm:$0xff]
        %v1649 = vld [vmem:[%s875 + $0x28] sm:$0xff]
        %v1650 = vld [vmem:[%s875 + $0x30] sm:$0xff]
        %v1651 = vld [vmem:[%s875 + $0x38] sm:$0xff]
        %v1652 = vld [vmem:[%s878] sm:$0x1]
        %v1654 = vperm.slane %v1652, 0
        %vm1656 = vcmask 523264
        %v1658 = vsel %vm1656, %v1643, 0
        %1660 = vmatpush.msra.mxu0 0.0
        %1661 = vmatpush.msra.mxu0 0.0
        %1662 = vmatpush.msra.mxu0 0.0
        %1663 = vmatpush.msra.mxu0 0.0
        %1664 = vmatpush.msra.mxu0 0.0
        %1665 = vmatpush.msra.mxu0 0.0
        %1666 = vmatpush.msra.mxu0 0.0
        %1667 = vmatpush.msra.mxu0 0.0
        %1668 = vmatpush.msra.mxu0 %v1651
        %1669 = vmatpush.msra.mxu0 %v1650
        %1670 = vmatpush.msra.mxu0 %v1649
        %1671 = vmatpush.msra.mxu0 %v1648
        %1672 = vmatpush.msra.mxu0 %v1647
        %1673 = vmatpush.msra.mxu0 %v1646
        %1674 = vmatpush.msra.mxu0 %v1645
        %1675 = vmatpush.msra.mxu0 %v1644
        %1676 = vmatmul.f32.gmra.mxu0 %v1658
        %v1677 = vpop.f32.mrf.mxu0
        %v1678 = vadd.f32 %v1654, %v1677
        %1679 = vdwg.mxu0
        %v1680 = vadd.f32 %v1678, %v1603
        %v1681 = vld [vmem:[%s881] sm:$0x1]
        %v1682 = vld [vmem:[%s884] sm:$0x1]
        %v1683 = vsel %vm923, %v1680, 0.0
        %1684 = vadd.xlane.f32.xlu0 %v1683
        %v1685 = vpop.xlane.xlu0 %1684
        %v1686 = vmul.f32 %v1685, %v1570
        %v1687 = vsub.f32 %v1680, %v1686
        %v1688 = vmul.f32 %v1687, %v1687
        %v1689 = vsel %vm923, %v1688, 0.0
        %1690 = vadd.xlane.f32.xlu0 %v1689
        %v1691 = vpop.xlane.xlu0 %1690
        %v1692 = vmul.f32 %v1691, %v1570
        %v1693 = vadd.f32 %v1692, 1e-06
        %v1694 = vrsqrt.pop %v1693
        %v1695 = vmul.f32 %v1694, %v1693
        %v1696 = vmul.f32 %v1695, %v1694
        %v1697 = vmul.f32 0.5, %v1696
        %v1698 = vsub.f32 1.5, %v1697
        %v1699 = vmul.f32 %v1694, %v1698
        %vm1700 = vweird.f32 %v1693
        %vm1701 = vweird.f32 %v1694
        %vm1702 = vmor %vm1700, %vm1701
        %v1703 = vsel %vm1702, %v1694, %v1699
        %v1704 = vmul.f32 %v1687, %v1703
        %v1706 = vperm.slane %v1681, 0
        %v1708 = vmul.f32 %v1704, %v1706
        %v1710 = vperm.slane %v1682, 0
        %v1712 = vadd.f32 %v1708, %v1710
        %v1713 = vmul.f32 %v1712, %v1601
        %1714 = vst.msk [vmem:[%s832] sm:$0xff] %vm923, %v1713
        %s1715 = sand.u32 %s499, 1
        %s1716 = scalar_lea.sflag [#allocation4], %s1715
        %s1717 = sand.u32 %s499, 1
        %s1718 = smul.addr %s1717, 8
        %s1719 = scalar_lea.vmem [#allocation8], %s1718
        // Predicated region
        $region105: #{tpu_custom_call.1} parent=87 // pred_check
          %p1720 = pneg %p509
        $region106: #{tpu_custom_call.1} parent=87 // pred_check_branch
          %1722 = sbr.rel (%p1720) target = $region108
        $region107: #{tpu_custom_call.1} parent=87 // pred_region
          %1724 = vsyncadd %s1716, 0
          %s1725 = smul.addr %s41, 8
          %s1726 = scalar_lea.hbm %s17, %s1725
          %s1728 = sshll.u32 %s1719, 4
          %s1729 = int_to_ptr.vmem [resolvable:$true] %s1728
          %s1730 = sshll.u32 %s1726, 4
          %s1731 = int_to_ptr.hbm [resolvable:$true] %s1730
          %1733 = dma.vmem_to_hbm [thread:$0]  %s1729, 128, %s1731, %s1716
        $region108: #{tpu_custom_call.1} parent=87 // pred_fallthru
          _
      $region88: #{tpu_custom_call.1} parent=5 // pred_fallthru
        _
      %p1734 = scmp.le.s32.totalorder 2, %s32
      // Predicated region
      $region109: #{tpu_custom_call.1} parent=5 // pred_check
        %p1735 = pneg %p1734
      $region110: #{tpu_custom_call.1} parent=5 // pred_check_branch
        %1737 = sbr.rel (%p1735) target = $region112
      $region111: #{tpu_custom_call.1} parent=5 // pred_region
        %s1738 = ssub.s32 %s32, 2
        // Predicated region
        $region113: #{tpu_custom_call.1} parent=111 // pred_check
          %p1739 = pneg %p515
        $region114: #{tpu_custom_call.1} parent=111 // pred_check_branch
          %1741 = sbr.rel (%p1739) target = $region116
        $region115: #{tpu_custom_call.1} parent=111 // pred_region
          %s1742 = sand.u32 %s500, 1
          %s1743 = scalar_lea.sflag [#allocation4], %s1742
          %s1744 = sand.u32 %s500, 1
          %s1745 = smul.addr %s1744, 8
          %s1746 = scalar_lea.vmem [#allocation8], %s1745
          %1748 = dma.done %s1743, 128
        $region116: #{tpu_custom_call.1} parent=111 // pred_fallthru
          _
      $region112: #{tpu_custom_call.1} parent=5 // pred_fallthru
        _
    $region6: #{tpu_custom_call.1} parent=1 // loop_footer
      %s36 = sadd.s32 1, %s32
    $region7: #{tpu_custom_call.1} parent=1 // loop_footer_branch
      %31 = sbr.rel target = $region3
    $region8: #{tpu_custom_call.1} parent=1 // loop_exit
      _
    %1749 = vsyncpa [#allocation3], 1
    %s1750 = scalar_lea.sflag [#allocation3], 1
    %1751 = vsyncpa %s1750, 1
    %1752 = vsyncpa [#allocation6], 1
    %s1753 = scalar_lea.sflag [#allocation6], 1
    %1754 = vsyncpa %s1753, 1
    %1755 = vsyncpa [#allocation4], 1
    %s1756 = scalar_lea.sflag [#allocation4], 1
    %1757 = vsyncpa %s1756, 1

</llo_original>
